<compile_context>
chip_gen: v6e
topology: v6e:2x2x1
jax: 0.10.0
libtpu: 0.0.40
codegen_flags: <defaults>
</compile_context>

<pallas_src>
import functools

import jax
import jax.numpy as jnp
from jax import lax
from jax.experimental import pallas as pl
from jax.experimental.pallas import tpu as pltpu

EPS = 1e-5
_VMEM_LIMIT_BYTES = 48 * 1024 * 1024   # > 32 MiB default scoped limit, < 64 MiB (v7x)


def _compiler_params():
    return pltpu.CompilerParams(
        dimension_semantics=("parallel",),        # shard grid across TCs (v7x)
        vmem_limit_bytes=_VMEM_LIMIT_BYTES,
    )


def _pick_tile(extent, target):
    """Largest multiple-of-8 divisor of `extent` that is <= target (and, when
    possible, <= extent // 2 so even the tiny demo exercises a real grid)."""
    if extent % 8 != 0:
        return extent
    cap = min(target, max(8, extent // 2))
    cap -= cap % 8
    for t in range(cap, 7, -8):
        if extent % t == 0:
            return t
    return extent


def _fold_bn(stats, gamma, beta, inv_count):
    """Training-mode BatchNorm folded into one per-channel FMA.

    stats: (2, C) f32 = [sum; sum-of-squares] over ALL N*H*W positions.
    Returns (scale, shift), each (1, C), so that bn(y) == y * scale + shift.
    Single-pass variance: var = E[y^2] - E[y]^2 (biased, as PyTorch uses for
    normalization in training mode).
    """
    mean = stats[0:1, :] * inv_count
    var = stats[1:2, :] * inv_count - mean * mean
    scale = gamma * lax.rsqrt(var + EPS)
    shift = beta - mean * scale
    return scale, shift


# ---------------------------------------------------------------------------
# Stage 1: conv1 (1x1) + per-tile bn1 partial statistics.  Row-tiled grid.
# ---------------------------------------------------------------------------
def _conv1_stats_kernel(x_ref, w1_ref, y1_ref, st_ref):
    y = jnp.dot(x_ref[...].astype(w1_ref.dtype), w1_ref[...],
                preferred_element_type=jnp.float32)
    y1_ref[...] = y
    st_ref[0, 0:1, :] = jnp.sum(y, axis=0, keepdims=True)
    st_ref[0, 1:2, :] = jnp.sum(y * y, axis=0, keepdims=True)


# ---------------------------------------------------------------------------
# Stage 2: bn1 + relu + conv2 (3x3, pad=1) as ONE K=9*P im2col matmul,
# + per-tile bn2 partial statistics.  Grid over images (halo-free tiling).
# ---------------------------------------------------------------------------
def _bn1_conv2_stats_kernel(y1_ref, st1_ref, g1_ref, b1_ref, w2_ref,
                            y2_ref, st_ref, pad_ref, *, inv_count):
    H, W, P = y1_ref.shape[1], y1_ref.shape[2], y1_ref.shape[3]

    scale, shift = _fold_bn(st1_ref[...], g1_ref[...], b1_ref[...], inv_count)
    a = jnp.maximum(y1_ref[0] * scale + shift, 0.0)            # (H, W, P) f32

    # Only the 1-pixel halo of the per-image scratch needs zeros; the interior
    # is fully overwritten every grid step (padding=1 semantics).
    pad_ref[0:1, :, :] = jnp.zeros((1, W + 2, P), jnp.float32)
    pad_ref[H + 1:H + 2, :, :] = jnp.zeros((1, W + 2, P), jnp.float32)
    pad_ref[1:H + 1, 0:1, :] = jnp.zeros((H, 1, P), jnp.float32)
    pad_ref[1:H + 1, W + 1:W + 2, :] = jnp.zeros((H, 1, P), jnp.float32)
    pad_ref[1:H + 1, 1:W + 1, :] = a

    # im2col: build the (H*W, 9*P) patch matrix and do a single MXU matmul
    # (K = 9*P) instead of nine K = P matmuls.
    cols = []
    for dh in range(3):
        for dw in range(3):
            cols.append(pad_ref[dh:dh + H, dw:dw + W, :].reshape(H * W, P))
    patch = jnp.concatenate(cols, axis=1).astype(w2_ref.dtype)  # (H*W, 9P)
    y = jnp.dot(patch, w2_ref[...], preferred_element_type=jnp.float32)

    y2_ref[...] = y.reshape(1, H, W, P)
    st_ref[0, 0:1, :] = jnp.sum(y, axis=0, keepdims=True)
    st_ref[0, 1:2, :] = jnp.sum(y * y, axis=0, keepdims=True)


# ---------------------------------------------------------------------------
# Stage 3: bn2 + relu + conv3 (1x1) + per-tile bn3 partial statistics.
# ---------------------------------------------------------------------------
def _bn2_conv3_stats_kernel(y2_ref, st2_ref, g2_ref, b2_ref, w3_ref,
                            y3_ref, st_ref, *, inv_count):
    scale, shift = _fold_bn(st2_ref[...], g2_ref[...], b2_ref[...], inv_count)
    a = jnp.maximum(y2_ref[...] * scale + shift, 0.0)          # (tile, P)
    y = jnp.dot(a.astype(w3_ref.dtype), w3_ref[...],
                preferred_element_type=jnp.float32)
    y3_ref[...] = y
    st_ref[0, 0:1, :] = jnp.sum(y, axis=0, keepdims=True)
    st_ref[0, 1:2, :] = jnp.sum(y * y, axis=0, keepdims=True)


# ---------------------------------------------------------------------------
# Stage 4: bn3 + identity residual + relu.  Operands are (rows, W*Cout) slabs
# so loads/stores are lane-dense (last dim = 128 here).
# ---------------------------------------------------------------------------
def _bn3_residual_relu_kernel(y3_ref, x_ref, sc_ref, sh_ref, out_ref):
    out_ref[...] = jnp.maximum(
        y3_ref[...] * sc_ref[...] + sh_ref[...] + x_ref[...], 0.0)


@functools.partial(jax.jit, static_argnames=("compute_dtype",))
def bottleneck_forward(x_nhwc, params, *, compute_dtype=jnp.bfloat16):
    N, H, W, Cin = x_nhwc.shape
    P = params["w1"].shape[1]
    Cout = params["w3"].shape[1]
    assert Cout == Cin, "identity residual requires inplanes == planes * 4"
    R = N * H * W
    inv_count = 1.0 / R

    cdt = compute_dtype
    w1 = params["w1"].astype(cdt)                     # (Cin, P)
    w2 = params["w2"].reshape(9 * P, P).astype(cdt)   # (3,3,P,P) -> (9P, P) im2col
    w3 = params["w3"].astype(cdt)                     # (P, Cout)
    gm1, bt1 = params["g1"], params["b1"]
    gm2, bt2 = params["g2"], params["b2"]

    x2d = x_nhwc.reshape(R, Cin).astype(jnp.float32)
    cparams = _compiler_params()

    # ---- stage 1: conv1 + partial bn1 stats (row-tiled) --------------------
    tr1 = _pick_tile(R, 1024)
    nt1 = R // tr1
    y1, p1 = pl.pallas_call(
        _conv1_stats_kernel,
        grid=(nt1,),
        in_specs=[
            pl.BlockSpec((tr1, Cin), lambda i: (i, 0)),
            pl.BlockSpec((Cin, P), lambda i: (0, 0)),
        ],
        out_specs=[
            pl.BlockSpec((tr1, P), lambda i: (i, 0)),
            pl.BlockSpec((1, 2, P), lambda i: (i, 0, 0)),
        ],
        out_shape=[
            jax.ShapeDtypeStruct((R, P), jnp.float32),
            jax.ShapeDtypeStruct((nt1, 2, P), jnp.float32),
        ],
        compiler_params=cparams,
    )(x2d, w1)
    stats1 = jnp.sum(p1, axis=0)       # (2, P) cross-tile combine (tiny glue)

    # ---- stage 2: bn1 + relu + conv2 (im2col) + partial bn2 stats ----------
    y2, p2 = pl.pallas_call(
        functools.partial(_bn1_conv2_stats_kernel, inv_count=inv_count),
        grid=(N,),
        in_specs=[
            pl.BlockSpec((1, H, W, P), lambda n: (n, 0, 0, 0)),
            pl.BlockSpec((2, P), lambda n: (0, 0)),
            pl.BlockSpec((1, P), lambda n: (0, 0)),
            pl.BlockSpec((1, P), lambda n: (0, 0)),
            pl.BlockSpec((9 * P, P), lambda n: (0, 0)),
        ],
        out_specs=[
            pl.BlockSpec((1, H, W, P), lambda n: (n, 0, 0, 0)),
            pl.BlockSpec((1, 2, P), lambda n: (n, 0, 0)),
        ],
        out_shape=[
            jax.ShapeDtypeStruct((N, H, W, P), jnp.float32),
            jax.ShapeDtypeStruct((N, 2, P), jnp.float32),
        ],
        scratch_shapes=[pltpu.VMEM((H + 2, W + 2, P), jnp.float32)],
        compiler_params=cparams,
    )(y1.reshape(N, H, W, P), stats1, gm1, bt1, w2)
    stats2 = jnp.sum(p2, axis=0)

    # ---- stage 3: bn2 + relu + conv3 + partial bn3 stats (row-tiled) -------
    tr3 = _pick_tile(R, 1024)
    nt3 = R // tr3
    y3, p3 = pl.pallas_call(
        functools.partial(_bn2_conv3_stats_kernel, inv_count=inv_count),
        grid=(nt3,),
        in_specs=[
            pl.BlockSpec((tr3, P), lambda i: (i, 0)),
            pl.BlockSpec((2, P), lambda i: (0, 0)),
            pl.BlockSpec((1, P), lambda i: (0, 0)),
            pl.BlockSpec((1, P), lambda i: (0, 0)),
            pl.BlockSpec((P, Cout), lambda i: (0, 0)),
        ],
        out_specs=[
            pl.BlockSpec((tr3, Cout), lambda i: (i, 0)),
            pl.BlockSpec((1, 2, Cout), lambda i: (i, 0, 0)),
        ],
        out_shape=[
            jax.ShapeDtypeStruct((R, Cout), jnp.float32),
            jax.ShapeDtypeStruct((nt3, 2, Cout), jnp.float32),
        ],
        compiler_params=cparams,
    )(y2.reshape(R, P), stats2, gm2, bt2, w3)
    stats3 = jnp.sum(p3, axis=0)       # (2, Cout)

    # ---- stage 4: bn3 + residual + relu, lane-dense epilogue ---------------
    # bn3's O(C) scale/shift finalization is wrapper glue so the epilogue
    # kernel is a pure (rows, W*Cout) FMA with full-lane, unmasked stores.
    mean3 = stats3[0] * inv_count
    var3 = stats3[1] * inv_count - mean3 * mean3
    scale3 = params["g3"].reshape(-1) * lax.rsqrt(var3 + EPS)
    shift3 = params["b3"].reshape(-1) - mean3 * scale3
    slab = W * Cout
    scale3_t = jnp.tile(scale3, W).reshape(1, slab)
    shift3_t = jnp.tile(shift3, W).reshape(1, slab)

    nh = N * H
    trh = _pick_tile(nh, 512)
    nt4 = nh // trh
    out_slab = pl.pallas_call(
        _bn3_residual_relu_kernel,
        grid=(nt4,),
        in_specs=[
            pl.BlockSpec((trh, slab), lambda i: (i, 0)),
            pl.BlockSpec((trh, slab), lambda i: (i, 0)),
            pl.BlockSpec((1, slab), lambda i: (0, 0)),
            pl.BlockSpec((1, slab), lambda i: (0, 0)),
        ],
        out_specs=pl.BlockSpec((trh, slab), lambda i: (i, 0)),
        out_shape=jax.ShapeDtypeStruct((nh, slab), jnp.float32),
        compiler_params=cparams,
    )(y3.reshape(nh, slab), x2d.reshape(nh, slab), scale3_t, shift3_t)

    return out_slab.reshape(N, H, W, Cout)


def reference(x, p, compute_dtype=jnp.float32):
    """Pure-JAX/XLA reference (NHWC / HWIO convs).  `compute_dtype` mirrors
    the kernel's MXU input dtype: conv operands are cast to it, accumulation
    and all BatchNorm math stay in f32."""
    dn = ("NHWC", "HWIO", "NHWC")
    cdt = compute_dtype

    def conv(a, w, padding):
        return lax.conv_general_dilated(
            a.astype(cdt), w.astype(cdt), (1, 1), padding,
            dimension_numbers=dn, precision=lax.Precision.HIGHEST,
            preferred_element_type=jnp.float32)

    def bn4(y, g, b):
        mean = jnp.mean(y, axis=(0, 1, 2), keepdims=True)
        var = jnp.mean((y - mean) ** 2, axis=(0, 1, 2), keepdims=True)
        return (y - mean) * lax.rsqrt(var + EPS) * g.reshape(1, 1, 1, -1) \
            + b.reshape(1, 1, 1, -1)

    y = conv(x, p["w1"][None, None], "VALID")
    y = jnp.maximum(bn4(y, p["g1"], p["b1"]), 0.0)
    y = conv(y, p["w2"], "SAME")
    y = jnp.maximum(bn4(y, p["g2"], p["b2"]), 0.0)
    y = conv(y, p["w3"][None, None], "VALID")
    y = bn4(y, p["g3"], p["b3"])
    return jnp.maximum(y + x, 0.0)


if __name__ == "__main__":
    inplanes, planes = 16, 4          # expansion=4 -> out channels == inplanes
    N, H, W = 2, 8, 8

    key = jax.random.PRNGKey(0)
    k_x, kw1, kw2, kw3 = jax.random.split(key, 4)

    params = {
        # conv weights pre-arranged for matmul: (Cin,Cout) / (kh,kw,Cin,Cout)
        "w1": 0.1 * jax.random.normal(kw1, (inplanes, planes), jnp.float32),
        "w2": 0.1 * jax.random.normal(kw2, (3, 3, planes, planes), jnp.float32),
        "w3": 0.1 * jax.random.normal(kw3, (planes, planes * 4), jnp.float32),
        # BatchNorm2d default init: weight=1, bias=0
        "g1": jnp.ones((1, planes), jnp.float32),
        "b1": jnp.zeros((1, planes), jnp.float32),
        "g2": jnp.ones((1, planes), jnp.float32),
        "b2": jnp.zeros((1, planes), jnp.float32),
        "g3": jnp.ones((1, planes * 4), jnp.float32),
        "b3": jnp.zeros((1, planes * 4), jnp.float32),
    }

    x = jax.random.normal(k_x, (N, H, W, inplanes), jnp.float32)

    # f32 MXU path: strict check against the f32 reference.
    out_f32 = jax.block_until_ready(
        bottleneck_forward(x, params, compute_dtype=jnp.float32))
    ref_f32 = reference(x, params, compute_dtype=jnp.float32)
    err_f32 = float(jnp.max(jnp.abs(out_f32 - ref_f32)))
    assert out_f32.shape == (N, H, W, inplanes), out_f32.shape
    assert err_f32 < 1e-3, f"f32 max abs error {err_f32}"

    # bf16 MXU path (default perf config): check against a dtype-matched
    # reference (bf16 conv operands, f32 accumulation, f32 BatchNorm).
    out_bf16 = jax.block_until_ready(
        bottleneck_forward(x, params, compute_dtype=jnp.bfloat16))
    ref_bf16 = reference(x, params, compute_dtype=jnp.bfloat16)
    err_bf16 = float(jnp.max(jnp.abs(out_bf16 - ref_bf16)))
    assert out_bf16.shape == (N, H, W, inplanes), out_bf16.shape
    assert err_bf16 < 2e-2, f"bf16 max abs error {err_bf16}"

    print("KERNEL_OK")
</pallas_src>

<mosaic_0001>
module attributes {stable_mosaic.version = 11 : i64} {
  func.func @_conv1_stats_kernel(%arg0: i32, %arg1: memref<64x16xf32, #tpu.memory_space<vmem>>, %arg2: memref<16x4xf32, #tpu.memory_space<vmem>>, %arg3: memref<64x4xf32, #tpu.memory_space<vmem>>, %arg4: memref<1x2x4xf32, #tpu.memory_space<vmem>>) attributes {dimension_semantics = [#tpu.dimension_semantics<parallel>], iteration_bounds = array<i64: 2>, scalar_prefetch = 0 : i64, scratch_operands = 0 : i64, tpu.core_type = #tpu.core_type<tc>, window_params = [{transform_indices = @transform_0, window_bounds = array<i64: 64, 16>}, {pipeline_mode = #tpu.pipeline_mode<synchronous>, transform_indices = @transform_1, window_bounds = array<i64: 16, 4>}, {transform_indices = @transform_2, window_bounds = array<i64: 64, 4>}, {transform_indices = @transform_3, window_bounds = array<i64: 1, 2, 4>}]} {
    %c0 = arith.constant 0 : index
    %c0_0 = arith.constant 0 : index
    %0 = vector.load %arg1[%c0, %c0_0] : memref<64x16xf32, #tpu.memory_space<vmem>>, vector<64x16xf32>
    %c0_1 = arith.constant 0 : index
    %c0_2 = arith.constant 0 : index
    %1 = vector.load %arg2[%c0_1, %c0_2] : memref<16x4xf32, #tpu.memory_space<vmem>>, vector<16x4xf32>
    %cst = arith.constant dense<0.000000e+00> : vector<64x4xf32>
    %2 = tpu.matmul %0, %1, %cst {dimension_numbers = #tpu.dot_dimension_numbers<[1], [0], [0], [1], [0, 0, 1, 1], [], []>} : vector<64x16xf32>, vector<16x4xf32>, vector<64x4xf32> -> vector<64x4xf32>
    %c0_3 = arith.constant 0 : index
    %c0_4 = arith.constant 0 : index
    %3 = vector.load %arg3[%c0_3, %c0_4] : memref<64x4xf32, #tpu.memory_space<vmem>>, vector<64x4xf32>
    tpu.vector_store %arg3[%c0_3, %c0_4], %2 {strides = array<i32>} : memref<64x4xf32, #tpu.memory_space<vmem>>, vector<64x4xf32>,
    %cst_5 = arith.constant dense<0.000000e+00> : vector<4xf32>
    %4 = vector.multi_reduction <add>, %2, %cst_5 [0] : vector<64x4xf32> to vector<4xf32>
    %5 = vector.shape_cast %4 : vector<4xf32> to vector<1x4xf32>
    %c0_6 = arith.constant 0 : index
    %c0_7 = arith.constant 0 : index
    %c0_8 = arith.constant 0 : index
    %6 = vector.load %arg4[%c0_6, %c0_7, %c0_8] : memref<1x2x4xf32, #tpu.memory_space<vmem>>, vector<1x1x4xf32>
    %7 = vector.shape_cast %6 : vector<1x1x4xf32> to vector<1x4xf32>
    %8 = vector.shape_cast %5 : vector<1x4xf32> to vector<1x1x4xf32>
    tpu.vector_store %arg4[%c0_6, %c0_7, %c0_8], %8 {strides = array<i32>} : memref<1x2x4xf32, #tpu.memory_space<vmem>>, vector<1x1x4xf32>,
    %9 = arith.mulf %2, %2 : vector<64x4xf32>
    %cst_9 = arith.constant dense<0.000000e+00> : vector<4xf32>
    %10 = vector.multi_reduction <add>, %9, %cst_9 [0] : vector<64x4xf32> to vector<4xf32>
    %11 = vector.shape_cast %10 : vector<4xf32> to vector<1x4xf32>
    %c0_10 = arith.constant 0 : index
    %c1 = arith.constant 1 : index
    %c0_11 = arith.constant 0 : index
    %12 = vector.load %arg4[%c0_10, %c1, %c0_11] : memref<1x2x4xf32, #tpu.memory_space<vmem>>, vector<1x1x4xf32>
    %13 = vector.shape_cast %12 : vector<1x1x4xf32> to vector<1x4xf32>
    %14 = vector.shape_cast %11 : vector<1x4xf32> to vector<1x1x4xf32>
    tpu.vector_store %arg4[%c0_10, %c1, %c0_11], %14 {strides = array<i32>} : memref<1x2x4xf32, #tpu.memory_space<vmem>>, vector<1x1x4xf32>,
    return
  }
  func.func @transform_0(%arg0: i32) -> (i32, i32) {
    %c0_i32 = arith.constant 0 : i32
    %c0_i32_0 = arith.constant 0 : i32
    return %arg0, %c0_i32 : i32, i32
  }
  func.func @transform_1(%arg0: i32) -> (i32, i32) {
    %c0_i32 = arith.constant 0 : i32
    %c0_i32_0 = arith.constant 0 : i32
    %c0_i32_1 = arith.constant 0 : i32
    return %c0_i32, %c0_i32_0 : i32, i32
  }
  func.func @transform_2(%arg0: i32) -> (i32, i32) {
    %c0_i32 = arith.constant 0 : i32
    %c0_i32_0 = arith.constant 0 : i32
    return %arg0, %c0_i32 : i32, i32
  }
  func.func @transform_3(%arg0: i32) -> (i32, i32, i32) {
    %c0_i32 = arith.constant 0 : i32
    %c0_i32_0 = arith.constant 0 : i32
    %c0_i32_1 = arith.constant 0 : i32
    return %arg0, %c0_i32, %c0_i32_0 : i32, i32, i32
  }
}

module attributes {stable_mosaic.version = 11 : i64} {
  func.func @_bn1_conv2_stats_kernel(%arg0: i32, %arg1: memref<1x8x8x4xf32, #tpu.memory_space<vmem>>, %arg2: memref<2x4xf32, #tpu.memory_space<vmem>>, %arg3: memref<1x4xf32, #tpu.memory_space<vmem>>, %arg4: memref<1x4xf32, #tpu.memory_space<vmem>>, %arg5: memref<36x4xf32, #tpu.memory_space<vmem>>, %arg6: memref<1x8x8x4xf32, #tpu.memory_space<vmem>>, %arg7: memref<1x2x4xf32, #tpu.memory_space<vmem>>, %arg8: memref<10x10x4xf32, #tpu.memory_space<vmem>>) attributes {dimension_semantics = [#tpu.dimension_semantics<parallel>], iteration_bounds = array<i64: 2>, scalar_prefetch = 0 : i64, scratch_operands = 1 : i64, tpu.core_type = #tpu.core_type<tc>, window_params = [{transform_indices = @transform_0, window_bounds = array<i64: 1, 8, 8, 4>}, {pipeline_mode = #tpu.pipeline_mode<synchronous>, transform_indices = @transform_1, window_bounds = array<i64: 2, 4>}, {pipeline_mode = #tpu.pipeline_mode<synchronous>, transform_indices = @transform_2, window_bounds = array<i64: 1, 4>}, {pipeline_mode = #tpu.pipeline_mode<synchronous>, transform_indices = @transform_3, window_bounds = array<i64: 1, 4>}, {pipeline_mode = #tpu.pipeline_mode<synchronous>, transform_indices = @transform_4, window_bounds = array<i64: 36, 4>}, {transform_indices = @transform_5, window_bounds = array<i64: 1, 8, 8, 4>}, {transform_indices = @transform_6, window_bounds = array<i64: 1, 2, 4>}]} {
    %c0 = arith.constant 0 : index
    %c0_0 = arith.constant 0 : index
    %0 = vector.load %arg2[%c0, %c0_0] : memref<2x4xf32, #tpu.memory_space<vmem>>, vector<2x4xf32>
    %c0_1 = arith.constant 0 : index
    %c0_2 = arith.constant 0 : index
    %1 = vector.load %arg3[%c0_1, %c0_2] : memref<1x4xf32, #tpu.memory_space<vmem>>, vector<1x4xf32>
    %c0_3 = arith.constant 0 : index
    %c0_4 = arith.constant 0 : index
    %2 = vector.load %arg4[%c0_3, %c0_4] : memref<1x4xf32, #tpu.memory_space<vmem>>, vector<1x4xf32>
    %3 = vector.extract_strided_slice %0 {offsets = [0, 0], sizes = [1, 4], strides = [1, 1]} : vector<2x4xf32> to vector<1x4xf32>
    %cst = arith.constant 7.812500e-03 : f32
    %4 = vector.broadcast %cst : f32 to vector<1x4xf32>
    %5 = arith.mulf %3, %4 : vector<1x4xf32>
    %6 = vector.extract_strided_slice %0 {offsets = [1, 0], sizes = [1, 4], strides = [1, 1]} : vector<2x4xf32> to vector<1x4xf32>
    %cst_5 = arith.constant 7.812500e-03 : f32
    %7 = vector.broadcast %cst_5 : f32 to vector<1x4xf32>
    %8 = arith.mulf %6, %7 : vector<1x4xf32>
    %9 = arith.mulf %5, %5 : vector<1x4xf32>
    %10 = arith.subf %8, %9 : vector<1x4xf32>
    %cst_6 = arith.constant 9.99999974E-6 : f32
    %11 = vector.broadcast %cst_6 : f32 to vector<1x4xf32>
    %12 = arith.addf %10, %11 : vector<1x4xf32>
    %13 = math.rsqrt %12 : vector<1x4xf32>
    %14 = arith.mulf %1, %13 : vector<1x4xf32>
    %15 = arith.mulf %5, %14 : vector<1x4xf32>
    %16 = arith.subf %2, %15 : vector<1x4xf32>
    %c0_7 = arith.constant 0 : index
    %c0_8 = arith.constant 0 : index
    %c0_9 = arith.constant 0 : index
    %c0_10 = arith.constant 0 : index
    %17 = vector.load %arg1[%c0_7, %c0_8, %c0_9, %c0_10] : memref<1x8x8x4xf32, #tpu.memory_space<vmem>>, vector<1x8x8x4xf32>
    %18 = vector.shape_cast %17 : vector<1x8x8x4xf32> to vector<8x8x4xf32>
    %19 = vector.shape_cast %14 : vector<1x4xf32> to vector<1x1x4xf32>
    %20 = vector.broadcast %19 : vector<1x1x4xf32> to vector<8x8x4xf32>
    %21 = arith.mulf %18, %20 : vector<8x8x4xf32>
    %22 = vector.shape_cast %16 : vector<1x4xf32> to vector<1x1x4xf32>
    %23 = vector.broadcast %22 : vector<1x1x4xf32> to vector<8x8x4xf32>
    %24 = arith.addf %21, %23 : vector<8x8x4xf32>
    %cst_11 = arith.constant 0.000000e+00 : f32
    %25 = vector.broadcast %cst_11 : f32 to vector<8x8x4xf32>
    %26 = arith.maximumf %24, %25 : vector<8x8x4xf32>
    %cst_12 = arith.constant 0.000000e+00 : f32
    %27 = vector.broadcast %cst_12 : f32 to vector<1x10x4xf32>
    %c0_13 = arith.constant 0 : index
    %c0_14 = arith.constant 0 : index
    %c0_15 = arith.constant 0 : index
    %28 = vector.load %arg8[%c0_13, %c0_14, %c0_15] : memref<10x10x4xf32, #tpu.memory_space<vmem>>, vector<1x10x4xf32>
    tpu.vector_store %arg8[%c0_13, %c0_14, %c0_15], %27 {strides = array<i32>} : memref<10x10x4xf32, #tpu.memory_space<vmem>>, vector<1x10x4xf32>,
    %cst_16 = arith.constant 0.000000e+00 : f32
    %29 = vector.broadcast %cst_16 : f32 to vector<1x10x4xf32>
    %c9 = arith.constant 9 : index
    %c0_17 = arith.constant 0 : index
    %c0_18 = arith.constant 0 : index
    %30 = vector.load %arg8[%c9, %c0_17, %c0_18] : memref<10x10x4xf32, #tpu.memory_space<vmem>>, vector<1x10x4xf32>
    tpu.vector_store %arg8[%c9, %c0_17, %c0_18], %29 {strides = array<i32>} : memref<10x10x4xf32, #tpu.memory_space<vmem>>, vector<1x10x4xf32>,
    %cst_19 = arith.constant 0.000000e+00 : f32
    %31 = vector.broadcast %cst_19 : f32 to vector<8x1x4xf32>
    %c1 = arith.constant 1 : index
    %c0_20 = arith.constant 0 : index
    %c0_21 = arith.constant 0 : index
    %32 = vector.load %arg8[%c1, %c0_20, %c0_21] : memref<10x10x4xf32, #tpu.memory_space<vmem>>, vector<8x1x4xf32>
    tpu.vector_store %arg8[%c1, %c0_20, %c0_21], %31 {strides = array<i32>} : memref<10x10x4xf32, #tpu.memory_space<vmem>>, vector<8x1x4xf32>,
    %cst_22 = arith.constant 0.000000e+00 : f32
    %33 = vector.broadcast %cst_22 : f32 to vector<8x1x4xf32>
    %c1_23 = arith.constant 1 : index
    %c9_24 = arith.constant 9 : index
    %c0_25 = arith.constant 0 : index
    %34 = vector.load %arg8[%c1_23, %c9_24, %c0_25] : memref<10x10x4xf32, #tpu.memory_space<vmem>>, vector<8x1x4xf32>
    tpu.vector_store %arg8[%c1_23, %c9_24, %c0_25], %33 {strides = array<i32>} : memref<10x10x4xf32, #tpu.memory_space<vmem>>, vector<8x1x4xf32>,
    %c1_26 = arith.constant 1 : index
    %c1_27 = arith.constant 1 : index
    %c0_28 = arith.constant 0 : index
    %35 = vector.load %arg8[%c1_26, %c1_27, %c0_28] : memref<10x10x4xf32, #tpu.memory_space<vmem>>, vector<8x8x4xf32>
    tpu.vector_store %arg8[%c1_26, %c1_27, %c0_28], %26 {strides = array<i32>} : memref<10x10x4xf32, #tpu.memory_space<vmem>>, vector<8x8x4xf32>,
    %c0_29 = arith.constant 0 : index
    %c0_30 = arith.constant 0 : index
    %c0_31 = arith.constant 0 : index
    %36 = vector.load %arg8[%c0_29, %c0_30, %c0_31] : memref<10x10x4xf32, #tpu.memory_space<vmem>>, vector<8x8x4xf32>
    %37 = vector.shape_cast %36 : vector<8x8x4xf32> to vector<64x4xf32>
    %c0_32 = arith.constant 0 : index
    %c1_33 = arith.constant 1 : index
    %c0_34 = arith.constant 0 : index
    %38 = vector.load %arg8[%c0_32, %c1_33, %c0_34] : memref<10x10x4xf32, #tpu.memory_space<vmem>>, vector<8x8x4xf32>
    %39 = vector.shape_cast %38 : vector<8x8x4xf32> to vector<64x4xf32>
    %c0_35 = arith.constant 0 : index
    %c2 = arith.constant 2 : index
    %c0_36 = arith.constant 0 : index
    %40 = vector.load %arg8[%c0_35, %c2, %c0_36] : memref<10x10x4xf32, #tpu.memory_space<vmem>>, vector<8x8x4xf32>
    %41 = vector.shape_cast %40 : vector<8x8x4xf32> to vector<64x4xf32>
    %c1_37 = arith.constant 1 : index
    %c0_38 = arith.constant 0 : index
    %c0_39 = arith.constant 0 : index
    %42 = vector.load %arg8[%c1_37, %c0_38, %c0_39] : memref<10x10x4xf32, #tpu.memory_space<vmem>>, vector<8x8x4xf32>
    %43 = vector.shape_cast %42 : vector<8x8x4xf32> to vector<64x4xf32>
    %c1_40 = arith.constant 1 : index
    %c1_41 = arith.constant 1 : index
    %c0_42 = arith.constant 0 : index
    %44 = vector.load %arg8[%c1_40, %c1_41, %c0_42] : memref<10x10x4xf32, #tpu.memory_space<vmem>>, vector<8x8x4xf32>
    %45 = vector.shape_cast %44 : vector<8x8x4xf32> to vector<64x4xf32>
    %c1_43 = arith.constant 1 : index
    %c2_44 = arith.constant 2 : index
    %c0_45 = arith.constant 0 : index
    %46 = vector.load %arg8[%c1_43, %c2_44, %c0_45] : memref<10x10x4xf32, #tpu.memory_space<vmem>>, vector<8x8x4xf32>
    %47 = vector.shape_cast %46 : vector<8x8x4xf32> to vector<64x4xf32>
    %c2_46 = arith.constant 2 : index
    %c0_47 = arith.constant 0 : index
    %c0_48 = arith.constant 0 : index
    %48 = vector.load %arg8[%c2_46, %c0_47, %c0_48] : memref<10x10x4xf32, #tpu.memory_space<vmem>>, vector<8x8x4xf32>
    %49 = vector.shape_cast %48 : vector<8x8x4xf32> to vector<64x4xf32>
    %c2_49 = arith.constant 2 : index
    %c1_50 = arith.constant 1 : index
    %c0_51 = arith.constant 0 : index
    %50 = vector.load %arg8[%c2_49, %c1_50, %c0_51] : memref<10x10x4xf32, #tpu.memory_space<vmem>>, vector<8x8x4xf32>
    %51 = vector.shape_cast %50 : vector<8x8x4xf32> to vector<64x4xf32>
    %c2_52 = arith.constant 2 : index
    %c2_53 = arith.constant 2 : index
    %c0_54 = arith.constant 0 : index
    %52 = vector.load %arg8[%c2_52, %c2_53, %c0_54] : memref<10x10x4xf32, #tpu.memory_space<vmem>>, vector<8x8x4xf32>
    %53 = vector.shape_cast %52 : vector<8x8x4xf32> to vector<64x4xf32>
    %54 = tpu.concatenate %37, %39, %41, %43, %45, %47, %49, %51, %53 in 1 : vector<64x4xf32>, vector<64x4xf32>, vector<64x4xf32>, vector<64x4xf32>, vector<64x4xf32>, vector<64x4xf32>, vector<64x4xf32>, vector<64x4xf32>, vector<64x4xf32> -> vector<64x36xf32>
    %c0_55 = arith.constant 0 : index
    %c0_56 = arith.constant 0 : index
    %55 = vector.load %arg5[%c0_55, %c0_56] : memref<36x4xf32, #tpu.memory_space<vmem>>, vector<36x4xf32>
    %cst_57 = arith.constant dense<0.000000e+00> : vector<64x4xf32>
    %56 = tpu.matmul %54, %55, %cst_57 {dimension_numbers = #tpu.dot_dimension_numbers<[1], [0], [0], [1], [0, 0, 1, 1], [], []>} : vector<64x36xf32>, vector<36x4xf32>, vector<64x4xf32> -> vector<64x4xf32>
    %57 = vector.shape_cast %56 : vector<64x4xf32> to vector<1x8x8x4xf32>
    %c0_58 = arith.constant 0 : index
    %c0_59 = arith.constant 0 : index
    %c0_60 = arith.constant 0 : index
    %c0_61 = arith.constant 0 : index
    %58 = vector.load %arg6[%c0_58, %c0_59, %c0_60, %c0_61] : memref<1x8x8x4xf32, #tpu.memory_space<vmem>>, vector<1x8x8x4xf32>
    tpu.vector_store %arg6[%c0_58, %c0_59, %c0_60, %c0_61], %57 {strides = array<i32>} : memref<1x8x8x4xf32, #tpu.memory_space<vmem>>, vector<1x8x8x4xf32>,
    %cst_62 = arith.constant dense<0.000000e+00> : vector<4xf32>
    %59 = vector.multi_reduction <add>, %56, %cst_62 [0] : vector<64x4xf32> to vector<4xf32>
    %60 = vector.shape_cast %59 : vector<4xf32> to vector<1x4xf32>
    %c0_63 = arith.constant 0 : index
    %c0_64 = arith.constant 0 : index
    %c0_65 = arith.constant 0 : index
    %61 = vector.load %arg7[%c0_63, %c0_64, %c0_65] : memref<1x2x4xf32, #tpu.memory_space<vmem>>, vector<1x1x4xf32>
    %62 = vector.shape_cast %61 : vector<1x1x4xf32> to vector<1x4xf32>
    %63 = vector.shape_cast %60 : vector<1x4xf32> to vector<1x1x4xf32>
    tpu.vector_store %arg7[%c0_63, %c0_64, %c0_65], %63 {strides = array<i32>} : memref<1x2x4xf32, #tpu.memory_space<vmem>>, vector<1x1x4xf32>,
    %64 = arith.mulf %56, %56 : vector<64x4xf32>
    %cst_66 = arith.constant dense<0.000000e+00> : vector<4xf32>
    %65 = vector.multi_reduction <add>, %64, %cst_66 [0] : vector<64x4xf32> to vector<4xf32>
    %66 = vector.shape_cast %65 : vector<4xf32> to vector<1x4xf32>
    %c0_67 = arith.constant 0 : index
    %c1_68 = arith.constant 1 : index
    %c0_69 = arith.constant 0 : index
    %67 = vector.load %arg7[%c0_67, %c1_68, %c0_69] : memref<1x2x4xf32, #tpu.memory_space<vmem>>, vector<1x1x4xf32>
    %68 = vector.shape_cast %67 : vector<1x1x4xf32> to vector<1x4xf32>
    %69 = vector.shape_cast %66 : vector<1x4xf32> to vector<1x1x4xf32>
    tpu.vector_store %arg7[%c0_67, %c1_68, %c0_69], %69 {strides = array<i32>} : memref<1x2x4xf32, #tpu.memory_space<vmem>>, vector<1x1x4xf32>,
    return
  }
  func.func @transform_0(%arg0: i32) -> (i32, i32, i32, i32) {
    %c0_i32 = arith.constant 0 : i32
    %c0_i32_0 = arith.constant 0 : i32
    %c0_i32_1 = arith.constant 0 : i32
    %c0_i32_2 = arith.constant 0 : i32
    return %arg0, %c0_i32, %c0_i32_0, %c0_i32_1 : i32, i32, i32, i32
  }
  func.func @transform_1(%arg0: i32) -> (i32, i32) {
    %c0_i32 = arith.constant 0 : i32
    %c0_i32_0 = arith.constant 0 : i32
    %c0_i32_1 = arith.constant 0 : i32
    return %c0_i32, %c0_i32_0 : i32, i32
  }
  func.func @transform_2(%arg0: i32) -> (i32, i32) {
    %c0_i32 = arith.constant 0 : i32
    %c0_i32_0 = arith.constant 0 : i32
    %c0_i32_1 = arith.constant 0 : i32
    return %c0_i32, %c0_i32_0 : i32, i32
  }
  func.func @transform_3(%arg0: i32) -> (i32, i32) {
    %c0_i32 = arith.constant 0 : i32
    %c0_i32_0 = arith.constant 0 : i32
    %c0_i32_1 = arith.constant 0 : i32
    return %c0_i32, %c0_i32_0 : i32, i32
  }
  func.func @transform_4(%arg0: i32) -> (i32, i32) {
    %c0_i32 = arith.constant 0 : i32
    %c0_i32_0 = arith.constant 0 : i32
    %c0_i32_1 = arith.constant 0 : i32
    return %c0_i32, %c0_i32_0 : i32, i32
  }
  func.func @transform_5(%arg0: i32) -> (i32, i32, i32, i32) {
    %c0_i32 = arith.constant 0 : i32
    %c0_i32_0 = arith.constant 0 : i32
    %c0_i32_1 = arith.constant 0 : i32
    %c0_i32_2 = arith.constant 0 : i32
    return %arg0, %c0_i32, %c0_i32_0, %c0_i32_1 : i32, i32, i32, i32
  }
  func.func @transform_6(%arg0: i32) -> (i32, i32, i32) {
    %c0_i32 = arith.constant 0 : i32
    %c0_i32_0 = arith.constant 0 : i32
    %c0_i32_1 = arith.constant 0 : i32
    return %arg0, %c0_i32, %c0_i32_0 : i32, i32, i32
  }
}

module attributes {stable_mosaic.version = 11 : i64} {
  func.func @_bn2_conv3_stats_kernel(%arg0: i32, %arg1: memref<64x4xf32, #tpu.memory_space<vmem>>, %arg2: memref<2x4xf32, #tpu.memory_space<vmem>>, %arg3: memref<1x4xf32, #tpu.memory_space<vmem>>, %arg4: memref<1x4xf32, #tpu.memory_space<vmem>>, %arg5: memref<4x16xf32, #tpu.memory_space<vmem>>, %arg6: memref<64x16xf32, #tpu.memory_space<vmem>>, %arg7: memref<1x2x16xf32, #tpu.memory_space<vmem>>) attributes {dimension_semantics = [#tpu.dimension_semantics<parallel>], iteration_bounds = array<i64: 2>, scalar_prefetch = 0 : i64, scratch_operands = 0 : i64, tpu.core_type = #tpu.core_type<tc>, window_params = [{transform_indices = @transform_0, window_bounds = array<i64: 64, 4>}, {pipeline_mode = #tpu.pipeline_mode<synchronous>, transform_indices = @transform_1, window_bounds = array<i64: 2, 4>}, {pipeline_mode = #tpu.pipeline_mode<synchronous>, transform_indices = @transform_2, window_bounds = array<i64: 1, 4>}, {pipeline_mode = #tpu.pipeline_mode<synchronous>, transform_indices = @transform_3, window_bounds = array<i64: 1, 4>}, {pipeline_mode = #tpu.pipeline_mode<synchronous>, transform_indices = @transform_4, window_bounds = array<i64: 4, 16>}, {transform_indices = @transform_5, window_bounds = array<i64: 64, 16>}, {transform_indices = @transform_6, window_bounds = array<i64: 1, 2, 16>}]} {
    %c0 = arith.constant 0 : index
    %c0_0 = arith.constant 0 : index
    %0 = vector.load %arg2[%c0, %c0_0] : memref<2x4xf32, #tpu.memory_space<vmem>>, vector<2x4xf32>
    %c0_1 = arith.constant 0 : index
    %c0_2 = arith.constant 0 : index
    %1 = vector.load %arg3[%c0_1, %c0_2] : memref<1x4xf32, #tpu.memory_space<vmem>>, vector<1x4xf32>
    %c0_3 = arith.constant 0 : index
    %c0_4 = arith.constant 0 : index
    %2 = vector.load %arg4[%c0_3, %c0_4] : memref<1x4xf32, #tpu.memory_space<vmem>>, vector<1x4xf32>
    %3 = vector.extract_strided_slice %0 {offsets = [0, 0], sizes = [1, 4], strides = [1, 1]} : vector<2x4xf32> to vector<1x4xf32>
    %cst = arith.constant 7.812500e-03 : f32
    %4 = vector.broadcast %cst : f32 to vector<1x4xf32>
    %5 = arith.mulf %3, %4 : vector<1x4xf32>
    %6 = vector.extract_strided_slice %0 {offsets = [1, 0], sizes = [1, 4], strides = [1, 1]} : vector<2x4xf32> to vector<1x4xf32>
    %cst_5 = arith.constant 7.812500e-03 : f32
    %7 = vector.broadcast %cst_5 : f32 to vector<1x4xf32>
    %8 = arith.mulf %6, %7 : vector<1x4xf32>
    %9 = arith.mulf %5, %5 : vector<1x4xf32>
    %10 = arith.subf %8, %9 : vector<1x4xf32>
    %cst_6 = arith.constant 9.99999974E-6 : f32
    %11 = vector.broadcast %cst_6 : f32 to vector<1x4xf32>
    %12 = arith.addf %10, %11 : vector<1x4xf32>
    %13 = math.rsqrt %12 : vector<1x4xf32>
    %14 = arith.mulf %1, %13 : vector<1x4xf32>
    %15 = arith.mulf %5, %14 : vector<1x4xf32>
    %16 = arith.subf %2, %15 : vector<1x4xf32>
    %c0_7 = arith.constant 0 : index
    %c0_8 = arith.constant 0 : index
    %17 = vector.load %arg1[%c0_7, %c0_8] : memref<64x4xf32, #tpu.memory_space<vmem>>, vector<64x4xf32>
    %18 = vector.broadcast %14 : vector<1x4xf32> to vector<64x4xf32>
    %19 = arith.mulf %17, %18 : vector<64x4xf32>
    %20 = vector.broadcast %16 : vector<1x4xf32> to vector<64x4xf32>
    %21 = arith.addf %19, %20 : vector<64x4xf32>
    %cst_9 = arith.constant 0.000000e+00 : f32
    %22 = vector.broadcast %cst_9 : f32 to vector<64x4xf32>
    %23 = arith.maximumf %21, %22 : vector<64x4xf32>
    %c0_10 = arith.constant 0 : index
    %c0_11 = arith.constant 0 : index
    %24 = vector.load %arg5[%c0_10, %c0_11] : memref<4x16xf32, #tpu.memory_space<vmem>>, vector<4x16xf32>
    %cst_12 = arith.constant dense<0.000000e+00> : vector<64x16xf32>
    %25 = tpu.matmul %23, %24, %cst_12 {dimension_numbers = #tpu.dot_dimension_numbers<[1], [0], [0], [1], [0, 0, 1, 1], [], []>} : vector<64x4xf32>, vector<4x16xf32>, vector<64x16xf32> -> vector<64x16xf32>
    %c0_13 = arith.constant 0 : index
    %c0_14 = arith.constant 0 : index
    %26 = vector.load %arg6[%c0_13, %c0_14] : memref<64x16xf32, #tpu.memory_space<vmem>>, vector<64x16xf32>
    tpu.vector_store %arg6[%c0_13, %c0_14], %25 {strides = array<i32>} : memref<64x16xf32, #tpu.memory_space<vmem>>, vector<64x16xf32>,
    %cst_15 = arith.constant dense<0.000000e+00> : vector<16xf32>
    %27 = vector.multi_reduction <add>, %25, %cst_15 [0] : vector<64x16xf32> to vector<16xf32>
    %28 = vector.shape_cast %27 : vector<16xf32> to vector<1x16xf32>
    %c0_16 = arith.constant 0 : index
    %c0_17 = arith.constant 0 : index
    %c0_18 = arith.constant 0 : index
    %29 = vector.load %arg7[%c0_16, %c0_17, %c0_18] : memref<1x2x16xf32, #tpu.memory_space<vmem>>, vector<1x1x16xf32>
    %30 = vector.shape_cast %29 : vector<1x1x16xf32> to vector<1x16xf32>
    %31 = vector.shape_cast %28 : vector<1x16xf32> to vector<1x1x16xf32>
    tpu.vector_store %arg7[%c0_16, %c0_17, %c0_18], %31 {strides = array<i32>} : memref<1x2x16xf32, #tpu.memory_space<vmem>>, vector<1x1x16xf32>,
    %32 = arith.mulf %25, %25 : vector<64x16xf32>
    %cst_19 = arith.constant dense<0.000000e+00> : vector<16xf32>
    %33 = vector.multi_reduction <add>, %32, %cst_19 [0] : vector<64x16xf32> to vector<16xf32>
    %34 = vector.shape_cast %33 : vector<16xf32> to vector<1x16xf32>
    %c0_20 = arith.constant 0 : index
    %c1 = arith.constant 1 : index
    %c0_21 = arith.constant 0 : index
    %35 = vector.load %arg7[%c0_20, %c1, %c0_21] : memref<1x2x16xf32, #tpu.memory_space<vmem>>, vector<1x1x16xf32>
    %36 = vector.shape_cast %35 : vector<1x1x16xf32> to vector<1x16xf32>
    %37 = vector.shape_cast %34 : vector<1x16xf32> to vector<1x1x16xf32>
    tpu.vector_store %arg7[%c0_20, %c1, %c0_21], %37 {strides = array<i32>} : memref<1x2x16xf32, #tpu.memory_space<vmem>>, vector<1x1x16xf32>,
    return
  }
  func.func @transform_0(%arg0: i32) -> (i32, i32) {
    %c0_i32 = arith.constant 0 : i32
    %c0_i32_0 = arith.constant 0 : i32
    return %arg0, %c0_i32 : i32, i32
  }
  func.func @transform_1(%arg0: i32) -> (i32, i32) {
    %c0_i32 = arith.constant 0 : i32
    %c0_i32_0 = arith.constant 0 : i32
    %c0_i32_1 = arith.constant 0 : i32
    return %c0_i32, %c0_i32_0 : i32, i32
  }
  func.func @transform_2(%arg0: i32) -> (i32, i32) {
    %c0_i32 = arith.constant 0 : i32
    %c0_i32_0 = arith.constant 0 : i32
    %c0_i32_1 = arith.constant 0 : i32
    return %c0_i32, %c0_i32_0 : i32, i32
  }
  func.func @transform_3(%arg0: i32) -> (i32, i32) {
    %c0_i32 = arith.constant 0 : i32
    %c0_i32_0 = arith.constant 0 : i32
    %c0_i32_1 = arith.constant 0 : i32
    return %c0_i32, %c0_i32_0 : i32, i32
  }
  func.func @transform_4(%arg0: i32) -> (i32, i32) {
    %c0_i32 = arith.constant 0 : i32
    %c0_i32_0 = arith.constant 0 : i32
    %c0_i32_1 = arith.constant 0 : i32
    return %c0_i32, %c0_i32_0 : i32, i32
  }
  func.func @transform_5(%arg0: i32) -> (i32, i32) {
    %c0_i32 = arith.constant 0 : i32
    %c0_i32_0 = arith.constant 0 : i32
    return %arg0, %c0_i32 : i32, i32
  }
  func.func @transform_6(%arg0: i32) -> (i32, i32, i32) {
    %c0_i32 = arith.constant 0 : i32
    %c0_i32_0 = arith.constant 0 : i32
    %c0_i32_1 = arith.constant 0 : i32
    return %arg0, %c0_i32, %c0_i32_0 : i32, i32, i32
  }
}

module attributes {stable_mosaic.version = 11 : i64} {
  func.func @_bn3_residual_relu_kernel(%arg0: i32, %arg1: memref<8x128xf32, #tpu.memory_space<vmem>>, %arg2: memref<8x128xf32, #tpu.memory_space<vmem>>, %arg3: memref<1x128xf32, #tpu.memory_space<vmem>>, %arg4: memref<1x128xf32, #tpu.memory_space<vmem>>, %arg5: memref<8x128xf32, #tpu.memory_space<vmem>>) attributes {dimension_semantics = [#tpu.dimension_semantics<parallel>], iteration_bounds = array<i64: 2>, scalar_prefetch = 0 : i64, scratch_operands = 0 : i64, tpu.core_type = #tpu.core_type<tc>, window_params = [{transform_indices = @transform_0, window_bounds = array<i64: 8, 128>}, {transform_indices = @transform_1, window_bounds = array<i64: 8, 128>}, {pipeline_mode = #tpu.pipeline_mode<synchronous>, transform_indices = @transform_2, window_bounds = array<i64: 1, 128>}, {pipeline_mode = #tpu.pipeline_mode<synchronous>, transform_indices = @transform_3, window_bounds = array<i64: 1, 128>}, {transform_indices = @transform_4, window_bounds = array<i64: 8, 128>}]} {
    %c0 = arith.constant 0 : index
    %c0_0 = arith.constant 0 : index
    %0 = vector.load %arg1[%c0, %c0_0] : memref<8x128xf32, #tpu.memory_space<vmem>>, vector<8x128xf32>
    %c0_1 = arith.constant 0 : index
    %c0_2 = arith.constant 0 : index
    %1 = vector.load %arg3[%c0_1, %c0_2] : memref<1x128xf32, #tpu.memory_space<vmem>>, vector<1x128xf32>
    %2 = vector.broadcast %1 : vector<1x128xf32> to vector<8x128xf32>
    %3 = arith.mulf %0, %2 : vector<8x128xf32>
    %c0_3 = arith.constant 0 : index
    %c0_4 = arith.constant 0 : index
    %4 = vector.load %arg4[%c0_3, %c0_4] : memref<1x128xf32, #tpu.memory_space<vmem>>, vector<1x128xf32>
    %5 = vector.broadcast %4 : vector<1x128xf32> to vector<8x128xf32>
    %6 = arith.addf %3, %5 : vector<8x128xf32>
    %c0_5 = arith.constant 0 : index
    %c0_6 = arith.constant 0 : index
    %7 = vector.load %arg2[%c0_5, %c0_6] : memref<8x128xf32, #tpu.memory_space<vmem>>, vector<8x128xf32>
    %8 = arith.addf %6, %7 : vector<8x128xf32>
    %cst = arith.constant 0.000000e+00 : f32
    %9 = vector.broadcast %cst : f32 to vector<8x128xf32>
    %10 = arith.maximumf %8, %9 : vector<8x128xf32>
    %c0_7 = arith.constant 0 : index
    %c0_8 = arith.constant 0 : index
    %11 = vector.load %arg5[%c0_7, %c0_8] : memref<8x128xf32, #tpu.memory_space<vmem>>, vector<8x128xf32>
    tpu.vector_store %arg5[%c0_7, %c0_8], %10 {strides = array<i32>} : memref<8x128xf32, #tpu.memory_space<vmem>>, vector<8x128xf32>,
    return
  }
  func.func @transform_0(%arg0: i32) -> (i32, i32) {
    %c0_i32 = arith.constant 0 : i32
    %c0_i32_0 = arith.constant 0 : i32
    return %arg0, %c0_i32 : i32, i32
  }
  func.func @transform_1(%arg0: i32) -> (i32, i32) {
    %c0_i32 = arith.constant 0 : i32
    %c0_i32_0 = arith.constant 0 : i32
    return %arg0, %c0_i32 : i32, i32
  }
  func.func @transform_2(%arg0: i32) -> (i32, i32) {
    %c0_i32 = arith.constant 0 : i32
    %c0_i32_0 = arith.constant 0 : i32
    %c0_i32_1 = arith.constant 0 : i32
    return %c0_i32, %c0_i32_0 : i32, i32
  }
  func.func @transform_3(%arg0: i32) -> (i32, i32) {
    %c0_i32 = arith.constant 0 : i32
    %c0_i32_0 = arith.constant 0 : i32
    %c0_i32_1 = arith.constant 0 : i32
    return %c0_i32, %c0_i32_0 : i32, i32
  }
  func.func @transform_4(%arg0: i32) -> (i32, i32) {
    %c0_i32 = arith.constant 0 : i32
    %c0_i32_0 = arith.constant 0 : i32
    return %arg0, %c0_i32 : i32, i32
  }
}

</mosaic_0001>

<llo_original>
// kernel: tile.13
$region0: #{tile.13}
  #allocation0 [shape = 's32[1]{0}', space=sflag, size = 0x4, scoped, tag = 'scoped memory for tile.13']
  %s0 = inlined_call_operand.vmem [shape: f32[16], index: 0, kind: input, shape index: {}]
  %s1 = inlined_call_operand.vmem [shape: f32[8,16], index: 1, kind: output, shape index: {}]
  // Predicated region
  $region2: #{tile.13} parent=0 // pred_check
    _
  $region3: #{tile.13} parent=0 // pred_check_branch
    %3 = sbr.rel (0) target = $region5
  $region4: #{tile.13} parent=0 // pred_region
    _
  $region5: #{tile.13} parent=0 // pred_fallthru
    _
  %v4 = vld [vmem:[%s0] ss:$0 sm:$0xff]
  %5 = vst [vmem:[%s1] sm:$0xff] %v4

// kernel: tile.14
$region0: #{tile.14}
  %s0 = inlined_call_operand.vmem [shape: f32[8,16], index: 0, kind: input, shape index: {}]
  %s1 = inlined_call_operand.vmem [shape: f32[1,128], index: 1, kind: output, shape index: {}]
  $region1: #{tile.14} parent=0
    #allocation0 [shape = 'u8[4096]{0}', space=vmem, size = 0x1000, scoped, tag = 'scoped mem for output reshape']
    %v2 = vld [vmem:[%s0] sm:$0x1]
    %vm3 = vcmask 130048
    %4 = vst.msk [vmem:[#allocation0] sm:$0x1] %vm3, %v2
    %s5 = scalar_lea.vmem %s0, 7
    %v6 = vld [vmem:[%s5] sm:$0x1]
    %7 = vrot.lane.b32.xlu0 %v6, 112
    %v8 = vpop.permute.xlu0 %7
    %vm9 = vcmask 1048448
    %10 = vst.msk [vmem:[#allocation0] sm:$0x1] %vm9, %v8
    %s11 = scalar_lea.vmem %s0, 6
    %v12 = vld [vmem:[%s11] sm:$0x1]
    %13 = vrot.lane.b32.xlu0 %v12, 96
    %v14 = vpop.permute.xlu0 %13
    %vm15 = vcmask 917248
    %16 = vst.msk [vmem:[#allocation0] sm:$0x1] %vm15, %v14
    %s17 = scalar_lea.vmem %s0, 5
    %v18 = vld [vmem:[%s17] sm:$0x1]
    %19 = vrot.lane.b32.xlu0 %v18, 80
    %v20 = vpop.permute.xlu0 %19
    %vm21 = vcmask 786048
    %22 = vst.msk [vmem:[#allocation0] sm:$0x1] %vm21, %v20
    %s23 = scalar_lea.vmem %s0, 4
    %v24 = vld [vmem:[%s23] sm:$0x1]
    %25 = vrot.lane.b32.xlu0 %v24, 64
    %v26 = vpop.permute.xlu0 %25
    %vm27 = vcmask 654848
    %28 = vst.msk [vmem:[#allocation0] sm:$0x1] %vm27, %v26
    %s29 = scalar_lea.vmem %s0, 3
    %v30 = vld [vmem:[%s29] sm:$0x1]
    %31 = vrot.lane.b32.xlu0 %v30, 48
    %v32 = vpop.permute.xlu0 %31
    %vm33 = vcmask 523648
    %34 = vst.msk [vmem:[#allocation0] sm:$0x1] %vm33, %v32
    %s35 = scalar_lea.vmem %s0, 2
    %v36 = vld [vmem:[%s35] sm:$0x1]
    %37 = vrot.lane.b32.xlu0 %v36, 32
    %v38 = vpop.permute.xlu0 %37
    %vm39 = vcmask 392448
    %40 = vst.msk [vmem:[#allocation0] sm:$0x1] %vm39, %v38
    %s41 = scalar_lea.vmem %s0, 1
    %v42 = vld [vmem:[%s41] sm:$0x1]
    %43 = vrot.lane.b32.xlu0 %v42, 16
    %v44 = vpop.permute.xlu0 %43
    %vm45 = vcmask 261248
    %46 = vst.msk [vmem:[#allocation0] sm:$0x1] %vm45, %v44
    %s48 = sshll.u32 1, 1
    %s49 = ssub.s32 %s48, 1
    %v51 = vld [vmem:[#allocation0] sm:%s49]
    %s52 = sshll.u32 1, 1
    %s53 = ssub.s32 %s52, 1
    %54 = vst [vmem:[%s1] sm:%s53] %v51

// kernel: bottleneck_forward.4
$region0: #{bottleneck_forward.4}
  #allocation0 [shape = 'u32[]', space=smem, size = 0x4, offset = 0x4, fixed_abs, tag = 'smem constant byte address 0x4 - core index']
  #allocation1 [shape = 'u32[144,128]{1,0:T(1,128)}', space=vmem, size = 0x12000, scoped, tag = 'internal scratch']
  %s0 = inlined_call_operand.hbm [shape: f32[128,16], index: 0, kind: input, shape index: {}]
  %s1 = inlined_call_operand.vmem [shape: f32[16,4], index: 1, kind: input, shape index: {}]
  %s2 = inlined_call_operand.vmem [shape: f32[128,4], index: 2, kind: output, shape index: {0}]
  %s3 = inlined_call_operand.vmem [shape: f32[2,2,4], index: 3, kind: output, shape index: {1}]
  %4 = xla_tuple %s2, %s3
  %s5 = sld [smem:[#allocation0]]
  $region53: #{bottleneck_forward.4} parent=0
    _
  %s7 = ssub.s32 1, %s5
  %s8 = scalar_select 0, %s7, %s5
  $region1: #{bottleneck_forward.4} parent=0
    #allocation2 [shape = 'u8[65536]{0}', space=vmem, size = 0x10000, scoped, tag = 'input window, operand 0']
    #allocation3 [shape = 's32[2]{0}', space=sflag, size = 0x8, scoped, tag = 'scoped memory for bottleneck_forward.4']
    %9 = vsyncpa [#allocation3], 0
    %s10 = scalar_lea.sflag [#allocation3], 1
    %11 = vsyncpa %s10, 0
    loop: start=0, step=1, limit=4
    $region2: #{bottleneck_forward.4} parent=1 // loop_pre_header
      _
    $region3: #{bottleneck_forward.4} parent=1 // loop_header
      %s13 = sphi 0, %s17
      %p14 = scmp.ge.s32.totalorder %s13, 4
      %s23 = sphi 0, %s25
      %s26 = sphi 0, %s23
      %s27 = sphi 0, %s26
      %s43 = sphi 0, %s27
      %s47 = sphi 0, %s47
      %s49 = sphi 0, %s47
      %s50 = sphi 0, %s49
      %s64 = sphi 0, %s50
      %s70 = sphi 0, %s72
      %s73 = sphi 0, %s70
      %s74 = sphi 0, %s73
      %s90 = sphi 0, %s74
      %s96 = sphi 0, %s98
      %s99 = sphi 0, %s96
      %s100 = sphi 0, %s99
      %s116 = sphi 0, %s100
    $region4: #{bottleneck_forward.4} parent=1 // loop_header_branch
      %16 = sbr.rel (%p14) target = $region8
    $region5: #{bottleneck_forward.4} parent=1 // loop_body
      %s18 = ssub.s32 %s13, 1
      %s19 = ssub.s32 %s13, 2
      %s20 = sadd.s32 %s13, 1
      %s21 = ssub.s32 %s13, %s20
      %p22 = scmp.eq.s32.totalorder %s21, 0
      %s24 = sadd.s32 %s23, 1
      %s25 = scalar_select %p22, %s23, %s24
      %p28 = pneg %p22
      %p29 = scmp.eq.s32.totalorder %s13, 1
      %p30 = por %p28, %p29
      %p31 = scmp.ne.s32.totalorder %s23, %s26
      %p32 = scmp.eq.s32.totalorder %s13, 0
      %p33 = por %p31, %p32
      %p34 = scmp.ne.s32.totalorder %s23, %s26
      %p35 = scmp.eq.s32.totalorder %s18, 1
      %p36 = por %p34, %p35
      %p37 = scmp.ne.s32.totalorder %s26, %s27
      %p38 = scmp.eq.s32.totalorder %s18, 0
      %p39 = por %p37, %p38
      %p40 = scmp.ne.s32.totalorder %s26, %s27
      %p41 = scmp.eq.s32.totalorder %s19, 1
      %p42 = por %p40, %p41
      %p44 = scmp.ne.s32.totalorder %s27, %s43
      %p45 = scmp.eq.s32.totalorder %s19, 0
      %p46 = por %p44, %p45
      %s48 = sadd.s32 %s47, 1
      %p51 = scmp.eq.s32.totalorder %s13, 1
      %p52 = scmp.ne.s32.totalorder %s47, %s49
      %p53 = scmp.eq.s32.totalorder %s13, 0
      %p54 = por %p52, %p53
      %p55 = scmp.ne.s32.totalorder %s47, %s49
      %p56 = scmp.eq.s32.totalorder %s18, 1
      %p57 = por %p55, %p56
      %p58 = scmp.ne.s32.totalorder %s49, %s50
      %p59 = scmp.eq.s32.totalorder %s18, 0
      %p60 = por %p58, %p59
      %p61 = scmp.ne.s32.totalorder %s49, %s50
      %p62 = scmp.eq.s32.totalorder %s19, 1
      %p63 = por %p61, %p62
      %p65 = scmp.ne.s32.totalorder %s50, %s64
      %p66 = scmp.eq.s32.totalorder %s19, 0
      %p67 = por %p65, %p66
      %s68 = ssub.s32 %s13, %s20
      %p69 = scmp.eq.s32.totalorder %s68, 0
      %s71 = sadd.s32 %s70, 1
      %s72 = scalar_select %p69, %s70, %s71
      %p75 = pneg %p69
      %p76 = scmp.eq.s32.totalorder %s13, 1
      %p77 = por %p75, %p76
      %p78 = scmp.ne.s32.totalorder %s70, %s73
      %p79 = scmp.eq.s32.totalorder %s13, 0
      %p80 = por %p78, %p79
      %p81 = scmp.ne.s32.totalorder %s70, %s73
      %p82 = scmp.eq.s32.totalorder %s18, 1
      %p83 = por %p81, %p82
      %p84 = scmp.ne.s32.totalorder %s73, %s74
      %p85 = scmp.eq.s32.totalorder %s18, 0
      %p86 = por %p84, %p85
      %p87 = scmp.ne.s32.totalorder %s73, %s74
      %p88 = scmp.eq.s32.totalorder %s19, 1
      %p89 = por %p87, %p88
      %p91 = scmp.ne.s32.totalorder %s74, %s90
      %p92 = scmp.eq.s32.totalorder %s19, 0
      %p93 = por %p91, %p92
      %s94 = ssub.s32 %s13, %s20
      %p95 = scmp.eq.s32.totalorder %s94, 0
      %s97 = sadd.s32 %s96, 1
      %s98 = scalar_select %p95, %s96, %s97
      %p101 = pneg %p95
      %p102 = scmp.eq.s32.totalorder %s13, 1
      %p103 = por %p101, %p102
      %p104 = scmp.ne.s32.totalorder %s96, %s99
      %p105 = scmp.eq.s32.totalorder %s13, 0
      %p106 = por %p104, %p105
      %p107 = scmp.ne.s32.totalorder %s96, %s99
      %p108 = scmp.eq.s32.totalorder %s18, 1
      %p109 = por %p107, %p108
      %p110 = scmp.ne.s32.totalorder %s99, %s100
      %p111 = scmp.eq.s32.totalorder %s18, 0
      %p112 = por %p110, %p111
      %p113 = scmp.ne.s32.totalorder %s99, %s100
      %p114 = scmp.eq.s32.totalorder %s19, 1
      %p115 = por %p113, %p114
      %p117 = scmp.ne.s32.totalorder %s100, %s116
      %p118 = scmp.eq.s32.totalorder %s19, 0
      %p119 = por %p117, %p118
      %p120 = scmp.le.s32.totalorder 1, %s13
      %p121 = scmp.lt.s32.totalorder %s13, 3
      %p122 = pnand %p120, %p121
      %p123 = pneg %p122
      // Predicated region
      $region9: #{bottleneck_forward.4} parent=5 // pred_check
        _
      $region10: #{bottleneck_forward.4} parent=5 // pred_check_branch
        %125 = sbr.rel (%p122) target = $region12
      $region11: #{bottleneck_forward.4} parent=5 // pred_region
        %s126 = ssub.s32 %s13, 1
        // Predicated region
        $region13: #{bottleneck_forward.4} parent=11 // pred_check
          %p127 = pneg %p60
        $region14: #{bottleneck_forward.4} parent=11 // pred_check_branch
          %129 = sbr.rel (%p127) target = $region16
        $region15: #{bottleneck_forward.4} parent=11 // pred_region
          _
        $region16: #{bottleneck_forward.4} parent=11 // pred_fallthru
          _
      $region12: #{bottleneck_forward.4} parent=5 // pred_fallthru
        _
      %p130 = scmp.lt.s32.totalorder %s13, 2
      // Predicated region
      $region17: #{bottleneck_forward.4} parent=5 // pred_check
        %p131 = pneg %p130
      $region18: #{bottleneck_forward.4} parent=5 // pred_check_branch
        %133 = sbr.rel (%p131) target = $region20
      $region19: #{bottleneck_forward.4} parent=5 // pred_region
        // Predicated region
        $region21: #{bottleneck_forward.4} parent=19 // pred_check
          %p134 = pneg %p33
        $region22: #{bottleneck_forward.4} parent=19 // pred_check_branch
          %136 = sbr.rel (%p134) target = $region24
        $region23: #{bottleneck_forward.4} parent=19 // pred_region
          %s137 = sand.u32 %s23, 1
          %s138 = scalar_lea.sflag [#allocation3], %s137
          %s139 = sand.u32 %s23, 1
          %s140 = smul.addr %s139, 64
          %s141 = scalar_lea.vmem [#allocation2], %s140
          %s142 = smul.u32 8, %s13
          %s144 = ssub.s32 1024, 1024
          %145 = vsyncadd %s138, %s144
          %s146 = smul.addr %s142, 128
          %s147 = scalar_lea.hbm %s0, %s146
          %s148 = sshll.u32 %s141, 4
          %s149 = int_to_ptr.vmem [resolvable:$true] %s148
          %154 = dma.hbm_to_vmem [thread:$0]  %s147, 1024, %s149, %s138, 128, 128, 8
        $region24: #{bottleneck_forward.4} parent=19 // pred_fallthru
          _
      $region20: #{bottleneck_forward.4} parent=5 // pred_fallthru
        _
      %p155 = scmp.le.s32.totalorder 1, %s13
      %p156 = scmp.lt.s32.totalorder %s13, 3
      %p157 = pnand %p155, %p156
      %p158 = pneg %p157
      // Predicated region
      $region25: #{bottleneck_forward.4} parent=5 // pred_check
        _
      $region26: #{bottleneck_forward.4} parent=5 // pred_check_branch
        %160 = sbr.rel (%p157) target = $region28
      $region27: #{bottleneck_forward.4} parent=5 // pred_region
        %s161 = ssub.s32 %s13, 1
        %s162 = sand.u32 %s26, 1
        %s163 = scalar_lea.sflag [#allocation3], %s162
        %s164 = sand.u32 %s26, 1
        %s165 = smul.addr %s164, 64
        %s166 = scalar_lea.vmem [#allocation2], %s165
        // Predicated region
        $region29: #{bottleneck_forward.4} parent=27 // pred_check
          %p167 = pneg %p39
        $region30: #{bottleneck_forward.4} parent=27 // pred_check_branch
          %169 = sbr.rel (%p167) target = $region32
        $region31: #{bottleneck_forward.4} parent=27 // pred_region
          %170 = dma.done %s163, 1024
        $region32: #{bottleneck_forward.4} parent=27 // pred_fallthru
          _
        %s171 = sand.u32 %s26, 1
        %s172 = scalar_lea.sflag [#allocation3], %s171
        %s173 = sand.u32 %s26, 1
        %s174 = smul.addr %s173, 64
        %s175 = scalar_lea.vmem [#allocation2], %s174
        %p176 = pneg %p39
        %p177 = pneg %p36
        %p178 = pneg %p60
        %p179 = pneg %p57
        %p180 = pneg %p86
        %p181 = pneg %p83
        %s182 = smul.u32 8, %s18
        %p183 = scmp.lt.s32.totalorder %s182, 15
        %s184 = scalar_select %p183, %s182, 15
        %s185 = smul.addr %s184, 8
        %s186 = scalar_lea.vmem %s2, %s185
        %p187 = pneg %p112
        %p188 = pneg %p109
        %p189 = scmp.lt.s32.totalorder %s18, 1
        %s190 = scalar_select %p189, %s18, 1
        %s191 = smul.addr %s190, 2
        %s192 = scalar_lea.vmem %s3, %s191
        %s193 = smul.u32 8, %s18
        %s194 = smul.u32 8, %s18
        %p195 = scmp.lt.s32.totalorder %s194, 15
        %s196 = scalar_select %p195, %s194, 15
        %s197 = smul.addr %s196, 8
        %s198 = scalar_lea.vmem %s2, %s197
        %s199 = smul.u32 8, %s18
        %p200 = scmp.lt.s32.totalorder %s18, 1
        %s201 = scalar_select %p200, %s18, 1
        %s202 = smul.addr %s201, 2
        %s203 = scalar_lea.vmem %s3, %s202
        %v204 = vld [vmem:[%s166] sm:$0xff]
        %v205 = vld [vmem:[%s166 + $0x8] sm:$0xff]
        %v206 = vld [vmem:[%s166 + $0x10] sm:$0xff]
        %v207 = vld [vmem:[%s166 + $0x18] sm:$0xff]
        %v208 = vld [vmem:[%s166 + $0x20] sm:$0xff]
        %v209 = vld [vmem:[%s166 + $0x28] sm:$0xff]
        %v210 = vld [vmem:[%s166 + $0x30] sm:$0xff]
        %v211 = vld [vmem:[%s166 + $0x38] sm:$0xff]
        %v212 = vld [vmem:[%s1] sm:$0xff]
        %v213 = vld [vmem:[%s1 + $0x8] sm:$0xff]
        %vm214 = vcmask 130048
        %v216 = vsel %vm214, %v204, 0
        %v219 = vsel %vm214, %v205, 0
        %v222 = vsel %vm214, %v206, 0
        %v225 = vsel %vm214, %v207, 0
        %v228 = vsel %vm214, %v208, 0
        %v231 = vsel %vm214, %v209, 0
        %v234 = vsel %vm214, %v210, 0
        %v237 = vsel %vm214, %v211, 0
        %239 = vmatprep.subr.mxu0 0.0
        %240 = vmatpush1.msra.mxu0 0.0
        %241 = vmatprep.subr.mxu0 0.0
        %242 = vmatpush1.msra.mxu0 0.0
        %243 = vmatprep.subr.mxu0 0.0
        %244 = vmatpush1.msra.mxu0 0.0
        %245 = vmatprep.subr.mxu0 0.0
        %246 = vmatpush1.msra.mxu0 0.0
        %247 = vmatprep.subr.mxu0 0.0
        %248 = vmatpush1.msra.mxu0 0.0
        %249 = vmatprep.subr.mxu0 0.0
        %250 = vmatpush1.msra.mxu0 0.0
        %251 = vmatprep.subr.mxu0 0.0
        %252 = vmatpush1.msra.mxu0 0.0
        %253 = vmatprep.subr.mxu0 0.0
        %254 = vmatpush1.msra.mxu0 0.0
        %255 = vmatprep.subr.mxu0 0.0
        %256 = vmatpush1.msra.mxu0 0.0
        %257 = vmatprep.subr.mxu0 0.0
        %258 = vmatpush1.msra.mxu0 0.0
        %259 = vmatprep.subr.mxu0 0.0
        %260 = vmatpush1.msra.mxu0 0.0
        %261 = vmatprep.subr.mxu0 0.0
        %262 = vmatpush1.msra.mxu0 0.0
        %263 = vmatprep.subr.mxu0 0.0
        %264 = vmatpush1.msra.mxu0 0.0
        %265 = vmatprep.subr.mxu0 0.0
        %266 = vmatpush1.msra.mxu0 0.0
        %267 = vmatprep.subr.mxu0 0.0
        %268 = vmatpush1.msra.mxu0 %v213
        %269 = vmatprep.subr.mxu0 0.0
        %270 = vmatpush1.msra.mxu0 %v212
        %271 = vmatprep.subr.mxu0 0.0
        %272 = vmatpush2.msra.mxu0 0.0
        %273 = vmatprep.subr.mxu0 0.0
        %274 = vmatpush2.msra.mxu0 0.0
        %275 = vmatprep.subr.mxu0 0.0
        %276 = vmatpush2.msra.mxu0 0.0
        %277 = vmatprep.subr.mxu0 0.0
        %278 = vmatpush2.msra.mxu0 0.0
        %279 = vmatprep.subr.mxu0 0.0
        %280 = vmatpush2.msra.mxu0 0.0
        %281 = vmatprep.subr.mxu0 0.0
        %282 = vmatpush2.msra.mxu0 0.0
        %283 = vmatprep.subr.mxu0 0.0
        %284 = vmatpush2.msra.mxu0 0.0
        %285 = vmatprep.subr.mxu0 0.0
        %286 = vmatpush2.msra.mxu0 0.0
        %287 = vmatprep.subr.mxu0 0.0
        %288 = vmatpush2.msra.mxu0 0.0
        %289 = vmatprep.subr.mxu0 0.0
        %290 = vmatpush2.msra.mxu0 0.0
        %291 = vmatprep.subr.mxu0 0.0
        %292 = vmatpush2.msra.mxu0 0.0
        %293 = vmatprep.subr.mxu0 0.0
        %294 = vmatpush2.msra.mxu0 0.0
        %295 = vmatprep.subr.mxu0 0.0
        %296 = vmatpush2.msra.mxu0 0.0
        %297 = vmatprep.subr.mxu0 0.0
        %298 = vmatpush2.msra.mxu0 0.0
        %299 = vmatprep.subr.mxu0 0.0
        %300 = vmatpush2.msra.mxu0 0.0
        %301 = vmatprep.subr.mxu0 0.0
        %302 = vmatpush2.msra.mxu0 0.0
        %303 = vmatprep.mubr.f32.mxu0 0.0
        %304 = vmatmul.mubr.f32.gmra.mxu0 %v216
        %v305 = vpop.f32.mrf.mxu0
        %v306 = vadd.f32 0.0, %v305
        %v307 = vpop.f32.mrf.mxu0
        %308 = vmatprep.mubr.f32.mxu0 0.0
        %309 = vmatmul.mubr.f32.gmra.mxu0 %v219
        %v310 = vpop.f32.mrf.mxu0
        %v311 = vadd.f32 0.0, %v310
        %v312 = vpop.f32.mrf.mxu0
        %313 = vmatprep.mubr.f32.mxu0 0.0
        %314 = vmatmul.mubr.f32.gmra.mxu0 %v222
        %v315 = vpop.f32.mrf.mxu0
        %v316 = vadd.f32 0.0, %v315
        %v317 = vpop.f32.mrf.mxu0
        %318 = vmatprep.mubr.f32.mxu0 0.0
        %319 = vmatmul.mubr.f32.gmra.mxu0 %v225
        %v320 = vpop.f32.mrf.mxu0
        %v321 = vadd.f32 0.0, %v320
        %v322 = vpop.f32.mrf.mxu0
        %323 = vmatprep.mubr.f32.mxu0 0.0
        %324 = vmatmul.mubr.f32.gmra.mxu0 %v228
        %v325 = vpop.f32.mrf.mxu0
        %v326 = vadd.f32 0.0, %v325
        %v327 = vpop.f32.mrf.mxu0
        %328 = vmatprep.mubr.f32.mxu0 0.0
        %329 = vmatmul.mubr.f32.gmra.mxu0 %v231
        %v330 = vpop.f32.mrf.mxu0
        %v331 = vadd.f32 0.0, %v330
        %v332 = vpop.f32.mrf.mxu0
        %333 = vmatprep.mubr.f32.mxu0 0.0
        %334 = vmatmul.mubr.f32.gmra.mxu0 %v234
        %v335 = vpop.f32.mrf.mxu0
        %v336 = vadd.f32 0.0, %v335
        %v337 = vpop.f32.mrf.mxu0
        %338 = vmatprep.mubr.f32.mxu0 0.0
        %339 = vmatmul.mubr.f32.gmra.mxu0 %v237
        %v340 = vpop.f32.mrf.mxu0
        %v341 = vadd.f32 0.0, %v340
        %v342 = vpop.f32.mrf.mxu0
        %343 = vdwg.mxu0
        %vm344 = vcmask 31744
        %345 = vst.msk [vmem:[%s198] sm:$0xff] %vm344, %v306
        %346 = vst.msk [vmem:[%s198 + $0x8] sm:$0xff] %vm344, %v311
        %347 = vst.msk [vmem:[%s198 + $0x10] sm:$0xff] %vm344, %v316
        %348 = vst.msk [vmem:[%s198 + $0x18] sm:$0xff] %vm344, %v321
        %349 = vst.msk [vmem:[%s198 + $0x20] sm:$0xff] %vm344, %v326
        %350 = vst.msk [vmem:[%s198 + $0x28] sm:$0xff] %vm344, %v331
        %351 = vst.msk [vmem:[%s198 + $0x30] sm:$0xff] %vm344, %v336
        %352 = vst.msk [vmem:[%s198 + $0x38] sm:$0xff] %vm344, %v341
        %v353 = vsel %vm344, %v306, 0.0
        %v354 = vsel %vm344, %v311, 0.0
        %v355 = vadd.f32 %v353, %v354
        %v356 = vsel %vm344, %v316, 0.0
        %v357 = vadd.f32 %v355, %v356
        %v358 = vsel %vm344, %v321, 0.0
        %v359 = vadd.f32 %v357, %v358
        %v360 = vsel %vm344, %v326, 0.0
        %v361 = vadd.f32 %v359, %v360
        %v362 = vsel %vm344, %v331, 0.0
        %v363 = vadd.f32 %v361, %v362
        %v364 = vsel %vm344, %v336, 0.0
        %v365 = vadd.f32 %v363, %v364
        %v366 = vsel %vm344, %v341, 0.0
        %v367 = vadd.f32 %v365, %v366
        %v368 = vrot.slane %v367, 4
        %v369 = vadd.f32 %v367, %v368
        %v370 = vrot.slane %v369, 2
        %v371 = vadd.f32 %v369, %v370
        %v372 = vrot.slane %v371, 1
        %v373 = vadd.f32 %v371, %v372
        %vm374 = vcmask 24576
        %375 = vst.msk [vmem:[%s203] sm:$0x1] %vm374, %v373
        %v376 = vmul.f32 %v306, %v306
        %v377 = vmul.f32 %v311, %v311
        %v378 = vmul.f32 %v316, %v316
        %v379 = vmul.f32 %v321, %v321
        %v380 = vmul.f32 %v326, %v326
        %v381 = vmul.f32 %v331, %v331
        %v382 = vmul.f32 %v336, %v336
        %v383 = vmul.f32 %v341, %v341
        %v384 = vsel %vm344, %v376, 0.0
        %v385 = vsel %vm344, %v377, 0.0
        %v386 = vadd.f32 %v384, %v385
        %v387 = vsel %vm344, %v378, 0.0
        %v388 = vadd.f32 %v386, %v387
        %v389 = vsel %vm344, %v379, 0.0
        %v390 = vadd.f32 %v388, %v389
        %v391 = vsel %vm344, %v380, 0.0
        %v392 = vadd.f32 %v390, %v391
        %v393 = vsel %vm344, %v381, 0.0
        %v394 = vadd.f32 %v392, %v393
        %v395 = vsel %vm344, %v382, 0.0
        %v396 = vadd.f32 %v394, %v395
        %v397 = vsel %vm344, %v383, 0.0
        %v398 = vadd.f32 %v396, %v397
        %v399 = vrot.slane %v398, 4
        %v400 = vadd.f32 %v398, %v399
        %v401 = vrot.slane %v400, 2
        %v402 = vadd.f32 %v400, %v401
        %v403 = vrot.slane %v402, 1
        %v404 = vadd.f32 %v402, %v403
        %405 = vst.msk [vmem:[%s203 + $0x1] sm:$0x1] %vm374, %v404
        %s406 = smul.u32 8, %s18
        %p407 = scmp.lt.s32.totalorder %s406, 15
        %s408 = scalar_select %p407, %s406, 15
        %s409 = smul.addr %s408, 8
        %s410 = scalar_lea.vmem %s2, %s409
        %p411 = scmp.lt.s32.totalorder %s18, 1
        %s412 = scalar_select %p411, %s18, 1
        %s413 = smul.addr %s412, 2
        %s414 = scalar_lea.vmem %s3, %s413
        // Predicated region
        $region33: #{bottleneck_forward.4} parent=27 // pred_check
          %p415 = pneg %p83
        $region34: #{bottleneck_forward.4} parent=27 // pred_check_branch
          %417 = sbr.rel (%p415) target = $region36
        $region35: #{bottleneck_forward.4} parent=27 // pred_region
          %s418 = smul.u32 8, %s18
        $region36: #{bottleneck_forward.4} parent=27 // pred_fallthru
          _
        // Predicated region
        $region37: #{bottleneck_forward.4} parent=27 // pred_check
          %p419 = pneg %p109
        $region38: #{bottleneck_forward.4} parent=27 // pred_check_branch
          %421 = sbr.rel (%p419) target = $region40
        $region39: #{bottleneck_forward.4} parent=27 // pred_region
          _
        $region40: #{bottleneck_forward.4} parent=27 // pred_fallthru
          _
      $region28: #{bottleneck_forward.4} parent=5 // pred_fallthru
        _
      %p422 = scmp.le.s32.totalorder 2, %s13
      // Predicated region
      $region41: #{bottleneck_forward.4} parent=5 // pred_check
        %p423 = pneg %p422
      $region42: #{bottleneck_forward.4} parent=5 // pred_check_branch
        %425 = sbr.rel (%p423) target = $region44
      $region43: #{bottleneck_forward.4} parent=5 // pred_region
        %s426 = ssub.s32 %s13, 2
        // Predicated region
        $region45: #{bottleneck_forward.4} parent=43 // pred_check
          %p427 = pneg %p89
        $region46: #{bottleneck_forward.4} parent=43 // pred_check_branch
          %429 = sbr.rel (%p427) target = $region48
        $region47: #{bottleneck_forward.4} parent=43 // pred_region
          %s430 = smul.u32 8, %s19
          %p431 = scmp.lt.s32.totalorder %s430, 15
          %s432 = scalar_select %p431, %s430, 15
          %s433 = smul.addr %s432, 8
          %s434 = scalar_lea.vmem %s2, %s433
        $region48: #{bottleneck_forward.4} parent=43 // pred_fallthru
          _
        // Predicated region
        $region49: #{bottleneck_forward.4} parent=43 // pred_check
          %p435 = pneg %p115
        $region50: #{bottleneck_forward.4} parent=43 // pred_check_branch
          %437 = sbr.rel (%p435) target = $region52
        $region51: #{bottleneck_forward.4} parent=43 // pred_region
          %p438 = scmp.lt.s32.totalorder %s19, 1
          %s439 = scalar_select %p438, %s19, 1
          %s440 = smul.addr %s439, 2
          %s441 = scalar_lea.vmem %s3, %s440
        $region52: #{bottleneck_forward.4} parent=43 // pred_fallthru
          _
      $region44: #{bottleneck_forward.4} parent=5 // pred_fallthru
        _
    $region6: #{bottleneck_forward.4} parent=1 // loop_footer
      %s17 = sadd.s32 1, %s13
    $region7: #{bottleneck_forward.4} parent=1 // loop_footer_branch
      %12 = sbr.rel target = $region3
    $region8: #{bottleneck_forward.4} parent=1 // loop_exit
      _
    %442 = vsyncpa [#allocation3], 1
    %s443 = scalar_lea.sflag [#allocation3], 1
    %444 = vsyncpa %s443, 1

// kernel: bottleneck_forward.6
$region0: #{bottleneck_forward.6}
  #allocation0 [shape = 'u32[]', space=smem, size = 0x4, offset = 0x4, fixed_abs, tag = 'smem constant byte address 0x4 - core index']
  #allocation1 [shape = 'u32[144,128]{1,0:T(1,128)}', space=vmem, size = 0x12000, scoped, tag = 'internal scratch']
  %s0 = inlined_call_operand.vmem [shape: f32[128,4], index: 0, kind: input, shape index: {}]
  %s1 = inlined_call_operand.vmem [shape: f32[2,4], index: 1, kind: input, shape index: {}]
  %s2 = inlined_call_operand.vmem [shape: f32[1,4], index: 2, kind: input, shape index: {}]
  %s3 = inlined_call_operand.vmem [shape: f32[1,4], index: 3, kind: input, shape index: {}]
  %s4 = inlined_call_operand.vmem [shape: f32[4,16], index: 4, kind: input, shape index: {}]
  %s5 = inlined_call_operand.vmem [shape: f32[128,16], index: 5, kind: output, shape index: {0}]
  %s6 = inlined_call_operand.vmem [shape: f32[2,2,16], index: 6, kind: output, shape index: {1}]
  %7 = xla_tuple %s5, %s6
  %s8 = sld [smem:[#allocation0]]
  $region61: #{bottleneck_forward.6} parent=0
    _
  %s10 = ssub.s32 1, %s8
  %s11 = scalar_select 0, %s10, %s8
  loop: start=0, step=1, limit=4
  $region2: #{bottleneck_forward.6} parent=0 // loop_pre_header
    _
  $region3: #{bottleneck_forward.6} parent=0 // loop_header
    %s13 = sphi 0, %s17
    %p14 = scmp.ge.s32.totalorder %s13, 4
    %s23 = sphi 0, %s25
    %s26 = sphi 0, %s23
    %s27 = sphi 0, %s26
    %s43 = sphi 0, %s27
    %s47 = sphi 0, %s47
    %s49 = sphi 0, %s47
    %s50 = sphi 0, %s49
    %s64 = sphi 0, %s50
    %s68 = sphi 0, %s68
    %s70 = sphi 0, %s68
    %s71 = sphi 0, %s70
    %s85 = sphi 0, %s71
    %s89 = sphi 0, %s89
    %s91 = sphi 0, %s89
    %s92 = sphi 0, %s91
    %s106 = sphi 0, %s92
    %s110 = sphi 0, %s110
    %s112 = sphi 0, %s110
    %s113 = sphi 0, %s112
    %s127 = sphi 0, %s113
    %s133 = sphi 0, %s135
    %s136 = sphi 0, %s133
    %s137 = sphi 0, %s136
    %s153 = sphi 0, %s137
    %s159 = sphi 0, %s161
    %s162 = sphi 0, %s159
    %s163 = sphi 0, %s162
    %s179 = sphi 0, %s163
  $region4: #{bottleneck_forward.6} parent=0 // loop_header_branch
    %16 = sbr.rel (%p14) target = $region8
  $region5: #{bottleneck_forward.6} parent=0 // loop_body
    %s18 = ssub.s32 %s13, 1
    %s19 = ssub.s32 %s13, 2
    %s20 = sadd.s32 %s13, 1
    %s21 = ssub.s32 %s13, %s20
    %p22 = scmp.eq.s32.totalorder %s21, 0
    %s24 = sadd.s32 %s23, 1
    %s25 = scalar_select %p22, %s23, %s24
    %p28 = pneg %p22
    %p29 = scmp.eq.s32.totalorder %s13, 1
    %p30 = por %p28, %p29
    %p31 = scmp.ne.s32.totalorder %s23, %s26
    %p32 = scmp.eq.s32.totalorder %s13, 0
    %p33 = por %p31, %p32
    %p34 = scmp.ne.s32.totalorder %s23, %s26
    %p35 = scmp.eq.s32.totalorder %s18, 1
    %p36 = por %p34, %p35
    %p37 = scmp.ne.s32.totalorder %s26, %s27
    %p38 = scmp.eq.s32.totalorder %s18, 0
    %p39 = por %p37, %p38
    %p40 = scmp.ne.s32.totalorder %s26, %s27
    %p41 = scmp.eq.s32.totalorder %s19, 1
    %p42 = por %p40, %p41
    %p44 = scmp.ne.s32.totalorder %s27, %s43
    %p45 = scmp.eq.s32.totalorder %s19, 0
    %p46 = por %p44, %p45
    %s48 = sadd.s32 %s47, 1
    %p51 = scmp.eq.s32.totalorder %s13, 1
    %p52 = scmp.ne.s32.totalorder %s47, %s49
    %p53 = scmp.eq.s32.totalorder %s13, 0
    %p54 = por %p52, %p53
    %p55 = scmp.ne.s32.totalorder %s47, %s49
    %p56 = scmp.eq.s32.totalorder %s18, 1
    %p57 = por %p55, %p56
    %p58 = scmp.ne.s32.totalorder %s49, %s50
    %p59 = scmp.eq.s32.totalorder %s18, 0
    %p60 = por %p58, %p59
    %p61 = scmp.ne.s32.totalorder %s49, %s50
    %p62 = scmp.eq.s32.totalorder %s19, 1
    %p63 = por %p61, %p62
    %p65 = scmp.ne.s32.totalorder %s50, %s64
    %p66 = scmp.eq.s32.totalorder %s19, 0
    %p67 = por %p65, %p66
    %s69 = sadd.s32 %s68, 1
    %p72 = scmp.eq.s32.totalorder %s13, 1
    %p73 = scmp.ne.s32.totalorder %s68, %s70
    %p74 = scmp.eq.s32.totalorder %s13, 0
    %p75 = por %p73, %p74
    %p76 = scmp.ne.s32.totalorder %s68, %s70
    %p77 = scmp.eq.s32.totalorder %s18, 1
    %p78 = por %p76, %p77
    %p79 = scmp.ne.s32.totalorder %s70, %s71
    %p80 = scmp.eq.s32.totalorder %s18, 0
    %p81 = por %p79, %p80
    %p82 = scmp.ne.s32.totalorder %s70, %s71
    %p83 = scmp.eq.s32.totalorder %s19, 1
    %p84 = por %p82, %p83
    %p86 = scmp.ne.s32.totalorder %s71, %s85
    %p87 = scmp.eq.s32.totalorder %s19, 0
    %p88 = por %p86, %p87
    %s90 = sadd.s32 %s89, 1
    %p93 = scmp.eq.s32.totalorder %s13, 1
    %p94 = scmp.ne.s32.totalorder %s89, %s91
    %p95 = scmp.eq.s32.totalorder %s13, 0
    %p96 = por %p94, %p95
    %p97 = scmp.ne.s32.totalorder %s89, %s91
    %p98 = scmp.eq.s32.totalorder %s18, 1
    %p99 = por %p97, %p98
    %p100 = scmp.ne.s32.totalorder %s91, %s92
    %p101 = scmp.eq.s32.totalorder %s18, 0
    %p102 = por %p100, %p101
    %p103 = scmp.ne.s32.totalorder %s91, %s92
    %p104 = scmp.eq.s32.totalorder %s19, 1
    %p105 = por %p103, %p104
    %p107 = scmp.ne.s32.totalorder %s92, %s106
    %p108 = scmp.eq.s32.totalorder %s19, 0
    %p109 = por %p107, %p108
    %s111 = sadd.s32 %s110, 1
    %p114 = scmp.eq.s32.totalorder %s13, 1
    %p115 = scmp.ne.s32.totalorder %s110, %s112
    %p116 = scmp.eq.s32.totalorder %s13, 0
    %p117 = por %p115, %p116
    %p118 = scmp.ne.s32.totalorder %s110, %s112
    %p119 = scmp.eq.s32.totalorder %s18, 1
    %p120 = por %p118, %p119
    %p121 = scmp.ne.s32.totalorder %s112, %s113
    %p122 = scmp.eq.s32.totalorder %s18, 0
    %p123 = por %p121, %p122
    %p124 = scmp.ne.s32.totalorder %s112, %s113
    %p125 = scmp.eq.s32.totalorder %s19, 1
    %p126 = por %p124, %p125
    %p128 = scmp.ne.s32.totalorder %s113, %s127
    %p129 = scmp.eq.s32.totalorder %s19, 0
    %p130 = por %p128, %p129
    %s131 = ssub.s32 %s13, %s20
    %p132 = scmp.eq.s32.totalorder %s131, 0
    %s134 = sadd.s32 %s133, 1
    %s135 = scalar_select %p132, %s133, %s134
    %p138 = pneg %p132
    %p139 = scmp.eq.s32.totalorder %s13, 1
    %p140 = por %p138, %p139
    %p141 = scmp.ne.s32.totalorder %s133, %s136
    %p142 = scmp.eq.s32.totalorder %s13, 0
    %p143 = por %p141, %p142
    %p144 = scmp.ne.s32.totalorder %s133, %s136
    %p145 = scmp.eq.s32.totalorder %s18, 1
    %p146 = por %p144, %p145
    %p147 = scmp.ne.s32.totalorder %s136, %s137
    %p148 = scmp.eq.s32.totalorder %s18, 0
    %p149 = por %p147, %p148
    %p150 = scmp.ne.s32.totalorder %s136, %s137
    %p151 = scmp.eq.s32.totalorder %s19, 1
    %p152 = por %p150, %p151
    %p154 = scmp.ne.s32.totalorder %s137, %s153
    %p155 = scmp.eq.s32.totalorder %s19, 0
    %p156 = por %p154, %p155
    %s157 = ssub.s32 %s13, %s20
    %p158 = scmp.eq.s32.totalorder %s157, 0
    %s160 = sadd.s32 %s159, 1
    %s161 = scalar_select %p158, %s159, %s160
    %p164 = pneg %p158
    %p165 = scmp.eq.s32.totalorder %s13, 1
    %p166 = por %p164, %p165
    %p167 = scmp.ne.s32.totalorder %s159, %s162
    %p168 = scmp.eq.s32.totalorder %s13, 0
    %p169 = por %p167, %p168
    %p170 = scmp.ne.s32.totalorder %s159, %s162
    %p171 = scmp.eq.s32.totalorder %s18, 1
    %p172 = por %p170, %p171
    %p173 = scmp.ne.s32.totalorder %s162, %s163
    %p174 = scmp.eq.s32.totalorder %s18, 0
    %p175 = por %p173, %p174
    %p176 = scmp.ne.s32.totalorder %s162, %s163
    %p177 = scmp.eq.s32.totalorder %s19, 1
    %p178 = por %p176, %p177
    %p180 = scmp.ne.s32.totalorder %s163, %s179
    %p181 = scmp.eq.s32.totalorder %s19, 0
    %p182 = por %p180, %p181
    %p183 = scmp.le.s32.totalorder 1, %s13
    %p184 = scmp.lt.s32.totalorder %s13, 3
    %p185 = pnand %p183, %p184
    %p186 = pneg %p185
    // Predicated region
    $region9: #{bottleneck_forward.6} parent=5 // pred_check
      _
    $region10: #{bottleneck_forward.6} parent=5 // pred_check_branch
      %188 = sbr.rel (%p185) target = $region12
    $region11: #{bottleneck_forward.6} parent=5 // pred_region
      %s189 = ssub.s32 %s13, 1
      // Predicated region
      $region13: #{bottleneck_forward.6} parent=11 // pred_check
        %p190 = pneg %p60
      $region14: #{bottleneck_forward.6} parent=11 // pred_check_branch
        %192 = sbr.rel (%p190) target = $region16
      $region15: #{bottleneck_forward.6} parent=11 // pred_region
        _
      $region16: #{bottleneck_forward.6} parent=11 // pred_fallthru
        _
      // Predicated region
      $region17: #{bottleneck_forward.6} parent=11 // pred_check
        %p193 = pneg %p81
      $region18: #{bottleneck_forward.6} parent=11 // pred_check_branch
        %195 = sbr.rel (%p193) target = $region20
      $region19: #{bottleneck_forward.6} parent=11 // pred_region
        _
      $region20: #{bottleneck_forward.6} parent=11 // pred_fallthru
        _
      // Predicated region
      $region21: #{bottleneck_forward.6} parent=11 // pred_check
        %p196 = pneg %p102
      $region22: #{bottleneck_forward.6} parent=11 // pred_check_branch
        %198 = sbr.rel (%p196) target = $region24
      $region23: #{bottleneck_forward.6} parent=11 // pred_region
        _
      $region24: #{bottleneck_forward.6} parent=11 // pred_fallthru
        _
      // Predicated region
      $region25: #{bottleneck_forward.6} parent=11 // pred_check
        %p199 = pneg %p123
      $region26: #{bottleneck_forward.6} parent=11 // pred_check_branch
        %201 = sbr.rel (%p199) target = $region28
      $region27: #{bottleneck_forward.6} parent=11 // pred_region
        _
      $region28: #{bottleneck_forward.6} parent=11 // pred_fallthru
        _
    $region12: #{bottleneck_forward.6} parent=5 // pred_fallthru
      _
    %p202 = scmp.lt.s32.totalorder %s13, 2
    // Predicated region
    $region29: #{bottleneck_forward.6} parent=5 // pred_check
      %p203 = pneg %p202
    $region30: #{bottleneck_forward.6} parent=5 // pred_check_branch
      %205 = sbr.rel (%p203) target = $region32
    $region31: #{bottleneck_forward.6} parent=5 // pred_region
      // Predicated region
      $region33: #{bottleneck_forward.6} parent=31 // pred_check
        %p206 = pneg %p33
      $region34: #{bottleneck_forward.6} parent=31 // pred_check_branch
        %208 = sbr.rel (%p206) target = $region36
      $region35: #{bottleneck_forward.6} parent=31 // pred_region
        %s209 = smul.u32 8, %s13
        %p210 = scmp.lt.s32.totalorder %s209, 15
        %s211 = scalar_select %p210, %s209, 15
        %s212 = smul.addr %s211, 8
        %s213 = scalar_lea.vmem %s0, %s212
        %s214 = smul.u32 8, %s13
      $region36: #{bottleneck_forward.6} parent=31 // pred_fallthru
        _
    $region32: #{bottleneck_forward.6} parent=5 // pred_fallthru
      _
    %p215 = scmp.le.s32.totalorder 1, %s13
    %p216 = scmp.lt.s32.totalorder %s13, 3
    %p217 = pnand %p215, %p216
    %p218 = pneg %p217
    // Predicated region
    $region37: #{bottleneck_forward.6} parent=5 // pred_check
      _
    $region38: #{bottleneck_forward.6} parent=5 // pred_check_branch
      %220 = sbr.rel (%p217) target = $region40
    $region39: #{bottleneck_forward.6} parent=5 // pred_region
      %s221 = ssub.s32 %s13, 1
      %s222 = smul.u32 8, %s18
      %p223 = scmp.lt.s32.totalorder %s222, 15
      %s224 = scalar_select %p223, %s222, 15
      %s225 = smul.addr %s224, 8
      %s226 = scalar_lea.vmem %s0, %s225
      %p227 = pneg %p39
      %p228 = pneg %p36
      %p229 = pneg %p60
      %p230 = pneg %p57
      %p231 = pneg %p81
      %p232 = pneg %p78
      %p233 = pneg %p102
      %p234 = pneg %p99
      %p235 = pneg %p123
      %p236 = pneg %p120
      %p237 = pneg %p149
      %p238 = pneg %p146
      %s239 = smul.u32 8, %s18
      %p240 = scmp.lt.s32.totalorder %s239, 15
      %s241 = scalar_select %p240, %s239, 15
      %s242 = smul.addr %s241, 8
      %s243 = scalar_lea.vmem %s5, %s242
      %p244 = pneg %p175
      %p245 = pneg %p172
      %p246 = scmp.lt.s32.totalorder %s18, 1
      %s247 = scalar_select %p246, %s18, 1
      %s248 = smul.addr %s247, 2
      %s249 = scalar_lea.vmem %s6, %s248
      %s250 = smul.u32 8, %s18
      %p251 = scmp.lt.s32.totalorder %s250, 15
      %s252 = scalar_select %p251, %s250, 15
      %s253 = smul.addr %s252, 8
      %s254 = scalar_lea.vmem %s0, %s253
      %s255 = smul.u32 8, %s18
      %s256 = smul.u32 8, %s18
      %p257 = scmp.lt.s32.totalorder %s256, 15
      %s258 = scalar_select %p257, %s256, 15
      %s259 = smul.addr %s258, 8
      %s260 = scalar_lea.vmem %s5, %s259
      %s261 = smul.u32 8, %s18
      %p262 = scmp.lt.s32.totalorder %s18, 1
      %s263 = scalar_select %p262, %s18, 1
      %s264 = smul.addr %s263, 2
      %s265 = scalar_lea.vmem %s6, %s264
      %v266 = vld [vmem:[%s1] sm:$0x3]
      %v267 = vld [vmem:[%s2] sm:$0x1]
      %v268 = vld [vmem:[%s3] sm:$0x1]
      %v269 = vmul.f32 %v266, 0.0078125
      %v270 = vmul.f32 %v269, %v269
      %v272 = vrot.slane %v270, 7
      %v274 = vsub.f32 %v269, %v272
      %v275 = vadd.f32 %v274, 1e-05
      %v276 = vrsqrt.pop %v275
      %v279 = vunpack.c.l.s4 1966171168
      %v280 = vunpack.c.0.s8 %v279
      %v281 = vlaneseq
      %v282 = vshrl.u32 %v281, 7
      %v283 = vsub.s32 %v280, %v282
      %v284 = vrot.slane %v276, %v283
      %v285 = vcombine.high %v284, %v284
      %v287 = vunpack.c.l.s4 1966171168
      %v288 = vunpack.c.0.s8 %v287
      %v289 = vlaneseq
      %v290 = vshrl.u32 %v289, 7
      %v291 = vsub.s32 %v288, %v290
      %v292 = vrot.slane %v285, %v291
      %v294 = vmul.f32 %v267, %v292
      %v295 = vmul.f32 %v269, %v294
      %v296 = vsub.f32 %v268, %v295
      %v297 = vld [vmem:[%s254] sm:$0xff]
      %v298 = vld [vmem:[%s254 + $0x8] sm:$0xff]
      %v299 = vld [vmem:[%s254 + $0x10] sm:$0xff]
      %v300 = vld [vmem:[%s254 + $0x18] sm:$0xff]
      %v301 = vld [vmem:[%s254 + $0x20] sm:$0xff]
      %v302 = vld [vmem:[%s254 + $0x28] sm:$0xff]
      %v303 = vld [vmem:[%s254 + $0x30] sm:$0xff]
      %v304 = vld [vmem:[%s254 + $0x38] sm:$0xff]
      %v306 = vlaneseq
      %v307 = vshrl.u32 %v306, 7
      %v308 = vsub.s32 0, %v307
      %v309 = vrot.slane %v294, %v308
      %v311 = vmul.f32 %v297, %v309
      %v312 = vmul.f32 %v298, %v309
      %v313 = vmul.f32 %v299, %v309
      %v314 = vmul.f32 %v300, %v309
      %v315 = vmul.f32 %v301, %v309
      %v316 = vmul.f32 %v302, %v309
      %v317 = vmul.f32 %v303, %v309
      %v318 = vmul.f32 %v304, %v309
      %v320 = vlaneseq
      %v321 = vshrl.u32 %v320, 7
      %v322 = vsub.s32 0, %v321
      %v323 = vrot.slane %v296, %v322
      %v325 = vadd.f32 %v311, %v323
      %v326 = vadd.f32 %v312, %v323
      %v327 = vadd.f32 %v313, %v323
      %v328 = vadd.f32 %v314, %v323
      %v329 = vadd.f32 %v315, %v323
      %v330 = vadd.f32 %v316, %v323
      %v331 = vadd.f32 %v317, %v323
      %v332 = vadd.f32 %v318, %v323
      %v333 = vmax.f32 %v325, 0.0
      %v334 = vmax.f32 %v326, 0.0
      %v335 = vmax.f32 %v327, 0.0
      %v336 = vmax.f32 %v328, 0.0
      %v337 = vmax.f32 %v329, 0.0
      %v338 = vmax.f32 %v330, 0.0
      %v339 = vmax.f32 %v331, 0.0
      %v340 = vmax.f32 %v332, 0.0
      %v341 = vld [vmem:[%s4] sm:$0xf]
      %vm342 = vcmask 31744
      %v344 = vsel %vm342, %v333, 0
      %v347 = vsel %vm342, %v334, 0
      %v350 = vsel %vm342, %v335, 0
      %v353 = vsel %vm342, %v336, 0
      %v356 = vsel %vm342, %v337, 0
      %v359 = vsel %vm342, %v338, 0
      %v362 = vsel %vm342, %v339, 0
      %v365 = vsel %vm342, %v340, 0
      %vm367 = vcmask 1043456
      %v369 = vsel %vm367, %v341, 0
      %371 = vmatprep.subr.mxu0 0.0
      %372 = vmatpush1.msra.mxu0 0.0
      %373 = vmatprep.subr.mxu0 0.0
      %374 = vmatpush1.msra.mxu0 0.0
      %375 = vmatprep.subr.mxu0 0.0
      %376 = vmatpush1.msra.mxu0 0.0
      %377 = vmatprep.subr.mxu0 0.0
      %378 = vmatpush1.msra.mxu0 0.0
      %379 = vmatprep.subr.mxu0 0.0
      %380 = vmatpush1.msra.mxu0 0.0
      %381 = vmatprep.subr.mxu0 0.0
      %382 = vmatpush1.msra.mxu0 0.0
      %383 = vmatprep.subr.mxu0 0.0
      %384 = vmatpush1.msra.mxu0 0.0
      %385 = vmatprep.subr.mxu0 0.0
      %386 = vmatpush1.msra.mxu0 0.0
      %387 = vmatprep.subr.mxu0 0.0
      %388 = vmatpush1.msra.mxu0 0.0
      %389 = vmatprep.subr.mxu0 0.0
      %390 = vmatpush1.msra.mxu0 0.0
      %391 = vmatprep.subr.mxu0 0.0
      %392 = vmatpush1.msra.mxu0 0.0
      %393 = vmatprep.subr.mxu0 0.0
      %394 = vmatpush1.msra.mxu0 0.0
      %395 = vmatprep.subr.mxu0 0.0
      %396 = vmatpush1.msra.mxu0 0.0
      %397 = vmatprep.subr.mxu0 0.0
      %398 = vmatpush1.msra.mxu0 0.0
      %399 = vmatprep.subr.mxu0 0.0
      %400 = vmatpush1.msra.mxu0 0.0
      %401 = vmatprep.subr.mxu0 0.0
      %402 = vmatpush1.msra.mxu0 %v369
      %403 = vmatprep.subr.mxu0 0.0
      %404 = vmatpush2.msra.mxu0 0.0
      %405 = vmatprep.subr.mxu0 0.0
      %406 = vmatpush2.msra.mxu0 0.0
      %407 = vmatprep.subr.mxu0 0.0
      %408 = vmatpush2.msra.mxu0 0.0
      %409 = vmatprep.subr.mxu0 0.0
      %410 = vmatpush2.msra.mxu0 0.0
      %411 = vmatprep.subr.mxu0 0.0
      %412 = vmatpush2.msra.mxu0 0.0
      %413 = vmatprep.subr.mxu0 0.0
      %414 = vmatpush2.msra.mxu0 0.0
      %415 = vmatprep.subr.mxu0 0.0
      %416 = vmatpush2.msra.mxu0 0.0
      %417 = vmatprep.subr.mxu0 0.0
      %418 = vmatpush2.msra.mxu0 0.0
      %419 = vmatprep.subr.mxu0 0.0
      %420 = vmatpush2.msra.mxu0 0.0
      %421 = vmatprep.subr.mxu0 0.0
      %422 = vmatpush2.msra.mxu0 0.0
      %423 = vmatprep.subr.mxu0 0.0
      %424 = vmatpush2.msra.mxu0 0.0
      %425 = vmatprep.subr.mxu0 0.0
      %426 = vmatpush2.msra.mxu0 0.0
      %427 = vmatprep.subr.mxu0 0.0
      %428 = vmatpush2.msra.mxu0 0.0
      %429 = vmatprep.subr.mxu0 0.0
      %430 = vmatpush2.msra.mxu0 0.0
      %431 = vmatprep.subr.mxu0 0.0
      %432 = vmatpush2.msra.mxu0 0.0
      %433 = vmatprep.subr.mxu0 0.0
      %434 = vmatpush2.msra.mxu0 0.0
      %435 = vmatprep.mubr.f32.mxu0 0.0
      %436 = vmatmul.mubr.f32.gmra.mxu0 %v344
      %v437 = vpop.f32.mrf.mxu0
      %v438 = vadd.f32 0.0, %v437
      %v439 = vpop.f32.mrf.mxu0
      %440 = vmatprep.mubr.f32.mxu0 0.0
      %441 = vmatmul.mubr.f32.gmra.mxu0 %v347
      %v442 = vpop.f32.mrf.mxu0
      %v443 = vadd.f32 0.0, %v442
      %v444 = vpop.f32.mrf.mxu0
      %445 = vmatprep.mubr.f32.mxu0 0.0
      %446 = vmatmul.mubr.f32.gmra.mxu0 %v350
      %v447 = vpop.f32.mrf.mxu0
      %v448 = vadd.f32 0.0, %v447
      %v449 = vpop.f32.mrf.mxu0
      %450 = vmatprep.mubr.f32.mxu0 0.0
      %451 = vmatmul.mubr.f32.gmra.mxu0 %v353
      %v452 = vpop.f32.mrf.mxu0
      %v453 = vadd.f32 0.0, %v452
      %v454 = vpop.f32.mrf.mxu0
      %455 = vmatprep.mubr.f32.mxu0 0.0
      %456 = vmatmul.mubr.f32.gmra.mxu0 %v356
      %v457 = vpop.f32.mrf.mxu0
      %v458 = vadd.f32 0.0, %v457
      %v459 = vpop.f32.mrf.mxu0
      %460 = vmatprep.mubr.f32.mxu0 0.0
      %461 = vmatmul.mubr.f32.gmra.mxu0 %v359
      %v462 = vpop.f32.mrf.mxu0
      %v463 = vadd.f32 0.0, %v462
      %v464 = vpop.f32.mrf.mxu0
      %465 = vmatprep.mubr.f32.mxu0 0.0
      %466 = vmatmul.mubr.f32.gmra.mxu0 %v362
      %v467 = vpop.f32.mrf.mxu0
      %v468 = vadd.f32 0.0, %v467
      %v469 = vpop.f32.mrf.mxu0
      %470 = vmatprep.mubr.f32.mxu0 0.0
      %471 = vmatmul.mubr.f32.gmra.mxu0 %v365
      %v472 = vpop.f32.mrf.mxu0
      %v473 = vadd.f32 0.0, %v472
      %v474 = vpop.f32.mrf.mxu0
      %475 = vdwg.mxu0
      %vm476 = vcmask 130048
      %477 = vst.msk [vmem:[%s260] sm:$0xff] %vm476, %v438
      %478 = vst.msk [vmem:[%s260 + $0x8] sm:$0xff] %vm476, %v443
      %479 = vst.msk [vmem:[%s260 + $0x10] sm:$0xff] %vm476, %v448
      %480 = vst.msk [vmem:[%s260 + $0x18] sm:$0xff] %vm476, %v453
      %481 = vst.msk [vmem:[%s260 + $0x20] sm:$0xff] %vm476, %v458
      %482 = vst.msk [vmem:[%s260 + $0x28] sm:$0xff] %vm476, %v463
      %483 = vst.msk [vmem:[%s260 + $0x30] sm:$0xff] %vm476, %v468
      %484 = vst.msk [vmem:[%s260 + $0x38] sm:$0xff] %vm476, %v473
      %v485 = vsel %vm476, %v438, 0.0
      %v486 = vsel %vm476, %v443, 0.0
      %v487 = vadd.f32 %v485, %v486
      %v488 = vsel %vm476, %v448, 0.0
      %v489 = vadd.f32 %v487, %v488
      %v490 = vsel %vm476, %v453, 0.0
      %v491 = vadd.f32 %v489, %v490
      %v492 = vsel %vm476, %v458, 0.0
      %v493 = vadd.f32 %v491, %v492
      %v494 = vsel %vm476, %v463, 0.0
      %v495 = vadd.f32 %v493, %v494
      %v496 = vsel %vm476, %v468, 0.0
      %v497 = vadd.f32 %v495, %v496
      %v498 = vsel %vm476, %v473, 0.0
      %v499 = vadd.f32 %v497, %v498
      %v500 = vrot.slane %v499, 4
      %v501 = vadd.f32 %v499, %v500
      %v502 = vrot.slane %v501, 2
      %v503 = vadd.f32 %v501, %v502
      %v504 = vrot.slane %v503, 1
      %v505 = vadd.f32 %v503, %v504
      %vm506 = vcmask 122880
      %507 = vst.msk [vmem:[%s265] sm:$0x1] %vm506, %v505
      %v508 = vmul.f32 %v438, %v438
      %v509 = vmul.f32 %v443, %v443
      %v510 = vmul.f32 %v448, %v448
      %v511 = vmul.f32 %v453, %v453
      %v512 = vmul.f32 %v458, %v458
      %v513 = vmul.f32 %v463, %v463
      %v514 = vmul.f32 %v468, %v468
      %v515 = vmul.f32 %v473, %v473
      %v516 = vsel %vm476, %v508, 0.0
      %v517 = vsel %vm476, %v509, 0.0
      %v518 = vadd.f32 %v516, %v517
      %v519 = vsel %vm476, %v510, 0.0
      %v520 = vadd.f32 %v518, %v519
      %v521 = vsel %vm476, %v511, 0.0
      %v522 = vadd.f32 %v520, %v521
      %v523 = vsel %vm476, %v512, 0.0
      %v524 = vadd.f32 %v522, %v523
      %v525 = vsel %vm476, %v513, 0.0
      %v526 = vadd.f32 %v524, %v525
      %v527 = vsel %vm476, %v514, 0.0
      %v528 = vadd.f32 %v526, %v527
      %v529 = vsel %vm476, %v515, 0.0
      %v530 = vadd.f32 %v528, %v529
      %v531 = vrot.slane %v530, 4
      %v532 = vadd.f32 %v530, %v531
      %v533 = vrot.slane %v532, 2
      %v534 = vadd.f32 %v532, %v533
      %v535 = vrot.slane %v534, 1
      %v536 = vadd.f32 %v534, %v535
      %537 = vst.msk [vmem:[%s265 + $0x1] sm:$0x1] %vm506, %v536
      %s538 = smul.u32 8, %s18
      %p539 = scmp.lt.s32.totalorder %s538, 15
      %s540 = scalar_select %p539, %s538, 15
      %s541 = smul.addr %s540, 8
      %s542 = scalar_lea.vmem %s5, %s541
      %p543 = scmp.lt.s32.totalorder %s18, 1
      %s544 = scalar_select %p543, %s18, 1
      %s545 = smul.addr %s544, 2
      %s546 = scalar_lea.vmem %s6, %s545
      // Predicated region
      $region41: #{bottleneck_forward.6} parent=39 // pred_check
        %p547 = pneg %p146
      $region42: #{bottleneck_forward.6} parent=39 // pred_check_branch
        %549 = sbr.rel (%p547) target = $region44
      $region43: #{bottleneck_forward.6} parent=39 // pred_region
        %s550 = smul.u32 8, %s18
      $region44: #{bottleneck_forward.6} parent=39 // pred_fallthru
        _
      // Predicated region
      $region45: #{bottleneck_forward.6} parent=39 // pred_check
        %p551 = pneg %p172
      $region46: #{bottleneck_forward.6} parent=39 // pred_check_branch
        %553 = sbr.rel (%p551) target = $region48
      $region47: #{bottleneck_forward.6} parent=39 // pred_region
        _
      $region48: #{bottleneck_forward.6} parent=39 // pred_fallthru
        _
    $region40: #{bottleneck_forward.6} parent=5 // pred_fallthru
      _
    %p554 = scmp.le.s32.totalorder 2, %s13
    // Predicated region
    $region49: #{bottleneck_forward.6} parent=5 // pred_check
      %p555 = pneg %p554
    $region50: #{bottleneck_forward.6} parent=5 // pred_check_branch
      %557 = sbr.rel (%p555) target = $region52
    $region51: #{bottleneck_forward.6} parent=5 // pred_region
      %s558 = ssub.s32 %s13, 2
      // Predicated region
      $region53: #{bottleneck_forward.6} parent=51 // pred_check
        %p559 = pneg %p152
      $region54: #{bottleneck_forward.6} parent=51 // pred_check_branch
        %561 = sbr.rel (%p559) target = $region56
      $region55: #{bottleneck_forward.6} parent=51 // pred_region
        %s562 = smul.u32 8, %s19
        %p563 = scmp.lt.s32.totalorder %s562, 15
        %s564 = scalar_select %p563, %s562, 15
        %s565 = smul.addr %s564, 8
        %s566 = scalar_lea.vmem %s5, %s565
      $region56: #{bottleneck_forward.6} parent=51 // pred_fallthru
        _
      // Predicated region
      $region57: #{bottleneck_forward.6} parent=51 // pred_check
        %p567 = pneg %p178
      $region58: #{bottleneck_forward.6} parent=51 // pred_check_branch
        %569 = sbr.rel (%p567) target = $region60
      $region59: #{bottleneck_forward.6} parent=51 // pred_region
        %p570 = scmp.lt.s32.totalorder %s19, 1
        %s571 = scalar_select %p570, %s19, 1
        %s572 = smul.addr %s571, 2
        %s573 = scalar_lea.vmem %s6, %s572
      $region60: #{bottleneck_forward.6} parent=51 // pred_fallthru
        _
    $region52: #{bottleneck_forward.6} parent=5 // pred_fallthru
      _
  $region6: #{bottleneck_forward.6} parent=0 // loop_footer
    %s17 = sadd.s32 1, %s13
  $region7: #{bottleneck_forward.6} parent=0 // loop_footer_branch
    %12 = sbr.rel target = $region3
  $region8: #{bottleneck_forward.6} parent=0 // loop_exit
    _

// kernel: bottleneck_forward.7
$region0: #{bottleneck_forward.7}
  #allocation0 [shape = 'u32[]', space=smem, size = 0x4, offset = 0x4, fixed_abs, tag = 'smem constant byte address 0x4 - core index']
  #allocation1 [shape = 'u32[144,128]{1,0:T(1,128)}', space=vmem, size = 0x12000, scoped, tag = 'internal scratch']
  %s0 = inlined_call_operand.vmem [shape: f32[16,128], index: 0, kind: input, shape index: {}]
  %s1 = inlined_call_operand.vmem [shape: f32[16,128], index: 1, kind: input, shape index: {}]
  %s2 = inlined_call_operand.vmem [shape: f32[1,128], index: 2, kind: input, shape index: {}]
  %s3 = inlined_call_operand.vmem [shape: f32[1,128], index: 3, kind: input, shape index: {}]
  %s4 = inlined_call_operand.vmem [shape: f32[16,128], index: 4, kind: output, shape index: {}]
  %s5 = sld [smem:[#allocation0]]
  $region49: #{bottleneck_forward.7} parent=0
    _
  %s7 = ssub.s32 1, %s5
  %s8 = scalar_select 0, %s7, %s5
  loop: start=0, step=1, limit=4
  $region2: #{bottleneck_forward.7} parent=0 // loop_pre_header
    _
  $region3: #{bottleneck_forward.7} parent=0 // loop_header
    %s10 = sphi 0, %s14
    %p11 = scmp.ge.s32.totalorder %s10, 4
    %s20 = sphi 0, %s22
    %s23 = sphi 0, %s20
    %s24 = sphi 0, %s23
    %s40 = sphi 0, %s24
    %s46 = sphi 0, %s48
    %s49 = sphi 0, %s46
    %s50 = sphi 0, %s49
    %s66 = sphi 0, %s50
    %s70 = sphi 0, %s70
    %s72 = sphi 0, %s70
    %s73 = sphi 0, %s72
    %s87 = sphi 0, %s73
    %s91 = sphi 0, %s91
    %s93 = sphi 0, %s91
    %s94 = sphi 0, %s93
    %s108 = sphi 0, %s94
    %s114 = sphi 0, %s116
    %s117 = sphi 0, %s114
    %s118 = sphi 0, %s117
    %s134 = sphi 0, %s118
  $region4: #{bottleneck_forward.7} parent=0 // loop_header_branch
    %13 = sbr.rel (%p11) target = $region8
  $region5: #{bottleneck_forward.7} parent=0 // loop_body
    %s15 = ssub.s32 %s10, 1
    %s16 = ssub.s32 %s10, 2
    %s17 = sadd.s32 %s10, 1
    %s18 = ssub.s32 %s10, %s17
    %p19 = scmp.eq.s32.totalorder %s18, 0
    %s21 = sadd.s32 %s20, 1
    %s22 = scalar_select %p19, %s20, %s21
    %p25 = pneg %p19
    %p26 = scmp.eq.s32.totalorder %s10, 1
    %p27 = por %p25, %p26
    %p28 = scmp.ne.s32.totalorder %s20, %s23
    %p29 = scmp.eq.s32.totalorder %s10, 0
    %p30 = por %p28, %p29
    %p31 = scmp.ne.s32.totalorder %s20, %s23
    %p32 = scmp.eq.s32.totalorder %s15, 1
    %p33 = por %p31, %p32
    %p34 = scmp.ne.s32.totalorder %s23, %s24
    %p35 = scmp.eq.s32.totalorder %s15, 0
    %p36 = por %p34, %p35
    %p37 = scmp.ne.s32.totalorder %s23, %s24
    %p38 = scmp.eq.s32.totalorder %s16, 1
    %p39 = por %p37, %p38
    %p41 = scmp.ne.s32.totalorder %s24, %s40
    %p42 = scmp.eq.s32.totalorder %s16, 0
    %p43 = por %p41, %p42
    %s44 = ssub.s32 %s10, %s17
    %p45 = scmp.eq.s32.totalorder %s44, 0
    %s47 = sadd.s32 %s46, 1
    %s48 = scalar_select %p45, %s46, %s47
    %p51 = pneg %p45
    %p52 = scmp.eq.s32.totalorder %s10, 1
    %p53 = por %p51, %p52
    %p54 = scmp.ne.s32.totalorder %s46, %s49
    %p55 = scmp.eq.s32.totalorder %s10, 0
    %p56 = por %p54, %p55
    %p57 = scmp.ne.s32.totalorder %s46, %s49
    %p58 = scmp.eq.s32.totalorder %s15, 1
    %p59 = por %p57, %p58
    %p60 = scmp.ne.s32.totalorder %s49, %s50
    %p61 = scmp.eq.s32.totalorder %s15, 0
    %p62 = por %p60, %p61
    %p63 = scmp.ne.s32.totalorder %s49, %s50
    %p64 = scmp.eq.s32.totalorder %s16, 1
    %p65 = por %p63, %p64
    %p67 = scmp.ne.s32.totalorder %s50, %s66
    %p68 = scmp.eq.s32.totalorder %s16, 0
    %p69 = por %p67, %p68
    %s71 = sadd.s32 %s70, 1
    %p74 = scmp.eq.s32.totalorder %s10, 1
    %p75 = scmp.ne.s32.totalorder %s70, %s72
    %p76 = scmp.eq.s32.totalorder %s10, 0
    %p77 = por %p75, %p76
    %p78 = scmp.ne.s32.totalorder %s70, %s72
    %p79 = scmp.eq.s32.totalorder %s15, 1
    %p80 = por %p78, %p79
    %p81 = scmp.ne.s32.totalorder %s72, %s73
    %p82 = scmp.eq.s32.totalorder %s15, 0
    %p83 = por %p81, %p82
    %p84 = scmp.ne.s32.totalorder %s72, %s73
    %p85 = scmp.eq.s32.totalorder %s16, 1
    %p86 = por %p84, %p85
    %p88 = scmp.ne.s32.totalorder %s73, %s87
    %p89 = scmp.eq.s32.totalorder %s16, 0
    %p90 = por %p88, %p89
    %s92 = sadd.s32 %s91, 1
    %p95 = scmp.eq.s32.totalorder %s10, 1
    %p96 = scmp.ne.s32.totalorder %s91, %s93
    %p97 = scmp.eq.s32.totalorder %s10, 0
    %p98 = por %p96, %p97
    %p99 = scmp.ne.s32.totalorder %s91, %s93
    %p100 = scmp.eq.s32.totalorder %s15, 1
    %p101 = por %p99, %p100
    %p102 = scmp.ne.s32.totalorder %s93, %s94
    %p103 = scmp.eq.s32.totalorder %s15, 0
    %p104 = por %p102, %p103
    %p105 = scmp.ne.s32.totalorder %s93, %s94
    %p106 = scmp.eq.s32.totalorder %s16, 1
    %p107 = por %p105, %p106
    %p109 = scmp.ne.s32.totalorder %s94, %s108
    %p110 = scmp.eq.s32.totalorder %s16, 0
    %p111 = por %p109, %p110
    %s112 = ssub.s32 %s10, %s17
    %p113 = scmp.eq.s32.totalorder %s112, 0
    %s115 = sadd.s32 %s114, 1
    %s116 = scalar_select %p113, %s114, %s115
    %p119 = pneg %p113
    %p120 = scmp.eq.s32.totalorder %s10, 1
    %p121 = por %p119, %p120
    %p122 = scmp.ne.s32.totalorder %s114, %s117
    %p123 = scmp.eq.s32.totalorder %s10, 0
    %p124 = por %p122, %p123
    %p125 = scmp.ne.s32.totalorder %s114, %s117
    %p126 = scmp.eq.s32.totalorder %s15, 1
    %p127 = por %p125, %p126
    %p128 = scmp.ne.s32.totalorder %s117, %s118
    %p129 = scmp.eq.s32.totalorder %s15, 0
    %p130 = por %p128, %p129
    %p131 = scmp.ne.s32.totalorder %s117, %s118
    %p132 = scmp.eq.s32.totalorder %s16, 1
    %p133 = por %p131, %p132
    %p135 = scmp.ne.s32.totalorder %s118, %s134
    %p136 = scmp.eq.s32.totalorder %s16, 0
    %p137 = por %p135, %p136
    %p138 = scmp.le.s32.totalorder 1, %s10
    %p139 = scmp.lt.s32.totalorder %s10, 3
    %p140 = pnand %p138, %p139
    %p141 = pneg %p140
    // Predicated region
    $region9: #{bottleneck_forward.7} parent=5 // pred_check
      _
    $region10: #{bottleneck_forward.7} parent=5 // pred_check_branch
      %143 = sbr.rel (%p140) target = $region12
    $region11: #{bottleneck_forward.7} parent=5 // pred_region
      %s144 = ssub.s32 %s10, 1
      // Predicated region
      $region13: #{bottleneck_forward.7} parent=11 // pred_check
        %p145 = pneg %p83
      $region14: #{bottleneck_forward.7} parent=11 // pred_check_branch
        %147 = sbr.rel (%p145) target = $region16
      $region15: #{bottleneck_forward.7} parent=11 // pred_region
        _
      $region16: #{bottleneck_forward.7} parent=11 // pred_fallthru
        _
      // Predicated region
      $region17: #{bottleneck_forward.7} parent=11 // pred_check
        %p148 = pneg %p104
      $region18: #{bottleneck_forward.7} parent=11 // pred_check_branch
        %150 = sbr.rel (%p148) target = $region20
      $region19: #{bottleneck_forward.7} parent=11 // pred_region
        _
      $region20: #{bottleneck_forward.7} parent=11 // pred_fallthru
        _
    $region12: #{bottleneck_forward.7} parent=5 // pred_fallthru
      _
    %p151 = scmp.lt.s32.totalorder %s10, 2
    // Predicated region
    $region21: #{bottleneck_forward.7} parent=5 // pred_check
      %p152 = pneg %p151
    $region22: #{bottleneck_forward.7} parent=5 // pred_check_branch
      %154 = sbr.rel (%p152) target = $region24
    $region23: #{bottleneck_forward.7} parent=5 // pred_region
      // Predicated region
      $region25: #{bottleneck_forward.7} parent=23 // pred_check
        %p155 = pneg %p30
      $region26: #{bottleneck_forward.7} parent=23 // pred_check_branch
        %157 = sbr.rel (%p155) target = $region28
      $region27: #{bottleneck_forward.7} parent=23 // pred_region
        %p158 = scmp.lt.s32.totalorder %s10, 1
        %s159 = scalar_select %p158, %s10, 1
        %s160 = smul.addr %s159, 8
        %s161 = scalar_lea.vmem %s0, %s160
      $region28: #{bottleneck_forward.7} parent=23 // pred_fallthru
        _
      // Predicated region
      $region29: #{bottleneck_forward.7} parent=23 // pred_check
        %p162 = pneg %p56
      $region30: #{bottleneck_forward.7} parent=23 // pred_check_branch
        %164 = sbr.rel (%p162) target = $region32
      $region31: #{bottleneck_forward.7} parent=23 // pred_region
        %p165 = scmp.lt.s32.totalorder %s10, 1
        %s166 = scalar_select %p165, %s10, 1
        %s167 = smul.addr %s166, 8
        %s168 = scalar_lea.vmem %s1, %s167
      $region32: #{bottleneck_forward.7} parent=23 // pred_fallthru
        _
    $region24: #{bottleneck_forward.7} parent=5 // pred_fallthru
      _
    %p169 = scmp.le.s32.totalorder 1, %s10
    %p170 = scmp.lt.s32.totalorder %s10, 3
    %p171 = pnand %p169, %p170
    %p172 = pneg %p171
    // Predicated region
    $region33: #{bottleneck_forward.7} parent=5 // pred_check
      _
    $region34: #{bottleneck_forward.7} parent=5 // pred_check_branch
      %174 = sbr.rel (%p171) target = $region36
    $region35: #{bottleneck_forward.7} parent=5 // pred_region
      %s175 = ssub.s32 %s10, 1
      %p176 = scmp.lt.s32.totalorder %s15, 1
      %s177 = scalar_select %p176, %s15, 1
      %s178 = smul.addr %s177, 8
      %s179 = scalar_lea.vmem %s0, %s178
      %p180 = pneg %p36
      %p181 = pneg %p33
      %p182 = scmp.lt.s32.totalorder %s15, 1
      %s183 = scalar_select %p182, %s15, 1
      %s184 = smul.addr %s183, 8
      %s185 = scalar_lea.vmem %s1, %s184
      %p186 = pneg %p62
      %p187 = pneg %p59
      %p188 = pneg %p83
      %p189 = pneg %p80
      %p190 = pneg %p104
      %p191 = pneg %p101
      %p192 = pneg %p130
      %p193 = pneg %p127
      %p194 = scmp.lt.s32.totalorder %s15, 1
      %s195 = scalar_select %p194, %s15, 1
      %s196 = smul.addr %s195, 8
      %s197 = scalar_lea.vmem %s4, %s196
      %p198 = scmp.lt.s32.totalorder %s15, 1
      %s199 = scalar_select %p198, %s15, 1
      %s200 = smul.addr %s199, 8
      %s201 = scalar_lea.vmem %s0, %s200
      %p202 = scmp.lt.s32.totalorder %s15, 1
      %s203 = scalar_select %p202, %s15, 1
      %s204 = smul.addr %s203, 8
      %s205 = scalar_lea.vmem %s1, %s204
      %p206 = scmp.lt.s32.totalorder %s15, 1
      %s207 = scalar_select %p206, %s15, 1
      %s208 = smul.addr %s207, 8
      %s209 = scalar_lea.vmem %s4, %s208
      %v210 = vld [vmem:[%s201] sm:$0xff]
      %v211 = vld [vmem:[%s2] sm:$0x1]
      %v213 = vlaneseq
      %v214 = vshrl.u32 %v213, 7
      %v215 = vsub.s32 0, %v214
      %v216 = vrot.slane %v211, %v215
      %v218 = vmul.f32 %v210, %v216
      %v219 = vld [vmem:[%s3] sm:$0x1]
      %v221 = vlaneseq
      %v222 = vshrl.u32 %v221, 7
      %v223 = vsub.s32 0, %v222
      %v224 = vrot.slane %v219, %v223
      %v226 = vadd.f32 %v218, %v224
      %v227 = vld [vmem:[%s205] sm:$0xff]
      %v228 = vadd.f32 %v226, %v227
      %v229 = vmax.f32 %v228, 0.0
      %230 = vst [vmem:[%s209] sm:$0xff] %v229
      %p231 = scmp.lt.s32.totalorder %s15, 1
      %s232 = scalar_select %p231, %s15, 1
      %s233 = smul.addr %s232, 8
      %s234 = scalar_lea.vmem %s4, %s233
      // Predicated region
      $region37: #{bottleneck_forward.7} parent=35 // pred_check
        %p235 = pneg %p127
      $region38: #{bottleneck_forward.7} parent=35 // pred_check_branch
        %237 = sbr.rel (%p235) target = $region40
      $region39: #{bottleneck_forward.7} parent=35 // pred_region
        _
      $region40: #{bottleneck_forward.7} parent=35 // pred_fallthru
        _
    $region36: #{bottleneck_forward.7} parent=5 // pred_fallthru
      _
    %p238 = scmp.le.s32.totalorder 2, %s10
    // Predicated region
    $region41: #{bottleneck_forward.7} parent=5 // pred_check
      %p239 = pneg %p238
    $region42: #{bottleneck_forward.7} parent=5 // pred_check_branch
      %241 = sbr.rel (%p239) target = $region44
    $region43: #{bottleneck_forward.7} parent=5 // pred_region
      %s242 = ssub.s32 %s10, 2
      // Predicated region
      $region45: #{bottleneck_forward.7} parent=43 // pred_check
        %p243 = pneg %p133
      $region46: #{bottleneck_forward.7} parent=43 // pred_check_branch
        %245 = sbr.rel (%p243) target = $region48
      $region47: #{bottleneck_forward.7} parent=43 // pred_region
        %p246 = scmp.lt.s32.totalorder %s16, 1
        %s247 = scalar_select %p246, %s16, 1
        %s248 = smul.addr %s247, 8
        %s249 = scalar_lea.vmem %s4, %s248
      $region48: #{bottleneck_forward.7} parent=43 // pred_fallthru
        _
    $region44: #{bottleneck_forward.7} parent=5 // pred_fallthru
      _
  $region6: #{bottleneck_forward.7} parent=0 // loop_footer
    %s14 = sadd.s32 1, %s10
  $region7: #{bottleneck_forward.7} parent=0 // loop_footer_branch
    %9 = sbr.rel target = $region3
  $region8: #{bottleneck_forward.7} parent=0 // loop_exit
    _

// kernel: bottleneck_forward.5
$region0: #{bottleneck_forward.5}
  #allocation0 [shape = 'u32[]', space=smem, size = 0x4, offset = 0x4, fixed_abs, tag = 'smem constant byte address 0x4 - core index']
  #allocation1 [shape = 'u32[144,128]{1,0:T(1,128)}', space=vmem, size = 0x12000, scoped, tag = 'internal scratch']
  #allocation2 [shape = 'f32[10,10,4]{2,1,0:T(8,128)}', space=vmem, size = 0x14000, scoped, tag = 'scratch operand']
  %s0 = inlined_call_operand.vmem [shape: f32[2,8,8,4], index: 0, kind: input, shape index: {}]
  %s1 = inlined_call_operand.vmem [shape: f32[2,4], index: 1, kind: input, shape index: {}]
  %s2 = inlined_call_operand.vmem [shape: f32[1,4], index: 2, kind: input, shape index: {}]
  %s3 = inlined_call_operand.vmem [shape: f32[1,4], index: 3, kind: input, shape index: {}]
  %s4 = inlined_call_operand.vmem [shape: f32[36,4], index: 4, kind: input, shape index: {}]
  %s5 = inlined_call_operand.vmem [shape: f32[2,8,8,4], index: 5, kind: output, shape index: {0}]
  %s6 = inlined_call_operand.vmem [shape: f32[2,2,4], index: 6, kind: output, shape index: {1}]
  %7 = xla_tuple %s5, %s6
  %s8 = sld [smem:[#allocation0]]
  $region61: #{bottleneck_forward.5} parent=0
    _
  %s10 = ssub.s32 1, %s8
  %s11 = scalar_select 0, %s10, %s8
  loop: start=0, step=1, limit=4
  $region2: #{bottleneck_forward.5} parent=0 // loop_pre_header
    _
  $region3: #{bottleneck_forward.5} parent=0 // loop_header
    %s13 = sphi 0, %s17
    %p14 = scmp.ge.s32.totalorder %s13, 4
    %s23 = sphi 0, %s25
    %s26 = sphi 0, %s23
    %s27 = sphi 0, %s26
    %s43 = sphi 0, %s27
    %s47 = sphi 0, %s47
    %s49 = sphi 0, %s47
    %s50 = sphi 0, %s49
    %s64 = sphi 0, %s50
    %s68 = sphi 0, %s68
    %s70 = sphi 0, %s68
    %s71 = sphi 0, %s70
    %s85 = sphi 0, %s71
    %s89 = sphi 0, %s89
    %s91 = sphi 0, %s89
    %s92 = sphi 0, %s91
    %s106 = sphi 0, %s92
    %s110 = sphi 0, %s110
    %s112 = sphi 0, %s110
    %s113 = sphi 0, %s112
    %s127 = sphi 0, %s113
    %s133 = sphi 0, %s135
    %s136 = sphi 0, %s133
    %s137 = sphi 0, %s136
    %s153 = sphi 0, %s137
    %s159 = sphi 0, %s161
    %s162 = sphi 0, %s159
    %s163 = sphi 0, %s162
    %s179 = sphi 0, %s163
  $region4: #{bottleneck_forward.5} parent=0 // loop_header_branch
    %16 = sbr.rel (%p14) target = $region8
  $region5: #{bottleneck_forward.5} parent=0 // loop_body
    %s18 = ssub.s32 %s13, 1
    %s19 = ssub.s32 %s13, 2
    %s20 = sadd.s32 %s13, 1
    %s21 = ssub.s32 %s13, %s20
    %p22 = scmp.eq.s32.totalorder %s21, 0
    %s24 = sadd.s32 %s23, 1
    %s25 = scalar_select %p22, %s23, %s24
    %p28 = pneg %p22
    %p29 = scmp.eq.s32.totalorder %s13, 1
    %p30 = por %p28, %p29
    %p31 = scmp.ne.s32.totalorder %s23, %s26
    %p32 = scmp.eq.s32.totalorder %s13, 0
    %p33 = por %p31, %p32
    %p34 = scmp.ne.s32.totalorder %s23, %s26
    %p35 = scmp.eq.s32.totalorder %s18, 1
    %p36 = por %p34, %p35
    %p37 = scmp.ne.s32.totalorder %s26, %s27
    %p38 = scmp.eq.s32.totalorder %s18, 0
    %p39 = por %p37, %p38
    %p40 = scmp.ne.s32.totalorder %s26, %s27
    %p41 = scmp.eq.s32.totalorder %s19, 1
    %p42 = por %p40, %p41
    %p44 = scmp.ne.s32.totalorder %s27, %s43
    %p45 = scmp.eq.s32.totalorder %s19, 0
    %p46 = por %p44, %p45
    %s48 = sadd.s32 %s47, 1
    %p51 = scmp.eq.s32.totalorder %s13, 1
    %p52 = scmp.ne.s32.totalorder %s47, %s49
    %p53 = scmp.eq.s32.totalorder %s13, 0
    %p54 = por %p52, %p53
    %p55 = scmp.ne.s32.totalorder %s47, %s49
    %p56 = scmp.eq.s32.totalorder %s18, 1
    %p57 = por %p55, %p56
    %p58 = scmp.ne.s32.totalorder %s49, %s50
    %p59 = scmp.eq.s32.totalorder %s18, 0
    %p60 = por %p58, %p59
    %p61 = scmp.ne.s32.totalorder %s49, %s50
    %p62 = scmp.eq.s32.totalorder %s19, 1
    %p63 = por %p61, %p62
    %p65 = scmp.ne.s32.totalorder %s50, %s64
    %p66 = scmp.eq.s32.totalorder %s19, 0
    %p67 = por %p65, %p66
    %s69 = sadd.s32 %s68, 1
    %p72 = scmp.eq.s32.totalorder %s13, 1
    %p73 = scmp.ne.s32.totalorder %s68, %s70
    %p74 = scmp.eq.s32.totalorder %s13, 0
    %p75 = por %p73, %p74
    %p76 = scmp.ne.s32.totalorder %s68, %s70
    %p77 = scmp.eq.s32.totalorder %s18, 1
    %p78 = por %p76, %p77
    %p79 = scmp.ne.s32.totalorder %s70, %s71
    %p80 = scmp.eq.s32.totalorder %s18, 0
    %p81 = por %p79, %p80
    %p82 = scmp.ne.s32.totalorder %s70, %s71
    %p83 = scmp.eq.s32.totalorder %s19, 1
    %p84 = por %p82, %p83
    %p86 = scmp.ne.s32.totalorder %s71, %s85
    %p87 = scmp.eq.s32.totalorder %s19, 0
    %p88 = por %p86, %p87
    %s90 = sadd.s32 %s89, 1
    %p93 = scmp.eq.s32.totalorder %s13, 1
    %p94 = scmp.ne.s32.totalorder %s89, %s91
    %p95 = scmp.eq.s32.totalorder %s13, 0
    %p96 = por %p94, %p95
    %p97 = scmp.ne.s32.totalorder %s89, %s91
    %p98 = scmp.eq.s32.totalorder %s18, 1
    %p99 = por %p97, %p98
    %p100 = scmp.ne.s32.totalorder %s91, %s92
    %p101 = scmp.eq.s32.totalorder %s18, 0
    %p102 = por %p100, %p101
    %p103 = scmp.ne.s32.totalorder %s91, %s92
    %p104 = scmp.eq.s32.totalorder %s19, 1
    %p105 = por %p103, %p104
    %p107 = scmp.ne.s32.totalorder %s92, %s106
    %p108 = scmp.eq.s32.totalorder %s19, 0
    %p109 = por %p107, %p108
    %s111 = sadd.s32 %s110, 1
    %p114 = scmp.eq.s32.totalorder %s13, 1
    %p115 = scmp.ne.s32.totalorder %s110, %s112
    %p116 = scmp.eq.s32.totalorder %s13, 0
    %p117 = por %p115, %p116
    %p118 = scmp.ne.s32.totalorder %s110, %s112
    %p119 = scmp.eq.s32.totalorder %s18, 1
    %p120 = por %p118, %p119
    %p121 = scmp.ne.s32.totalorder %s112, %s113
    %p122 = scmp.eq.s32.totalorder %s18, 0
    %p123 = por %p121, %p122
    %p124 = scmp.ne.s32.totalorder %s112, %s113
    %p125 = scmp.eq.s32.totalorder %s19, 1
    %p126 = por %p124, %p125
    %p128 = scmp.ne.s32.totalorder %s113, %s127
    %p129 = scmp.eq.s32.totalorder %s19, 0
    %p130 = por %p128, %p129
    %s131 = ssub.s32 %s13, %s20
    %p132 = scmp.eq.s32.totalorder %s131, 0
    %s134 = sadd.s32 %s133, 1
    %s135 = scalar_select %p132, %s133, %s134
    %p138 = pneg %p132
    %p139 = scmp.eq.s32.totalorder %s13, 1
    %p140 = por %p138, %p139
    %p141 = scmp.ne.s32.totalorder %s133, %s136
    %p142 = scmp.eq.s32.totalorder %s13, 0
    %p143 = por %p141, %p142
    %p144 = scmp.ne.s32.totalorder %s133, %s136
    %p145 = scmp.eq.s32.totalorder %s18, 1
    %p146 = por %p144, %p145
    %p147 = scmp.ne.s32.totalorder %s136, %s137
    %p148 = scmp.eq.s32.totalorder %s18, 0
    %p149 = por %p147, %p148
    %p150 = scmp.ne.s32.totalorder %s136, %s137
    %p151 = scmp.eq.s32.totalorder %s19, 1
    %p152 = por %p150, %p151
    %p154 = scmp.ne.s32.totalorder %s137, %s153
    %p155 = scmp.eq.s32.totalorder %s19, 0
    %p156 = por %p154, %p155
    %s157 = ssub.s32 %s13, %s20
    %p158 = scmp.eq.s32.totalorder %s157, 0
    %s160 = sadd.s32 %s159, 1
    %s161 = scalar_select %p158, %s159, %s160
    %p164 = pneg %p158
    %p165 = scmp.eq.s32.totalorder %s13, 1
    %p166 = por %p164, %p165
    %p167 = scmp.ne.s32.totalorder %s159, %s162
    %p168 = scmp.eq.s32.totalorder %s13, 0
    %p169 = por %p167, %p168
    %p170 = scmp.ne.s32.totalorder %s159, %s162
    %p171 = scmp.eq.s32.totalorder %s18, 1
    %p172 = por %p170, %p171
    %p173 = scmp.ne.s32.totalorder %s162, %s163
    %p174 = scmp.eq.s32.totalorder %s18, 0
    %p175 = por %p173, %p174
    %p176 = scmp.ne.s32.totalorder %s162, %s163
    %p177 = scmp.eq.s32.totalorder %s19, 1
    %p178 = por %p176, %p177
    %p180 = scmp.ne.s32.totalorder %s163, %s179
    %p181 = scmp.eq.s32.totalorder %s19, 0
    %p182 = por %p180, %p181
    %p183 = scmp.le.s32.totalorder 1, %s13
    %p184 = scmp.lt.s32.totalorder %s13, 3
    %p185 = pnand %p183, %p184
    %p186 = pneg %p185
    // Predicated region
    $region9: #{bottleneck_forward.5} parent=5 // pred_check
      _
    $region10: #{bottleneck_forward.5} parent=5 // pred_check_branch
      %188 = sbr.rel (%p185) target = $region12
    $region11: #{bottleneck_forward.5} parent=5 // pred_region
      %s189 = ssub.s32 %s13, 1
      // Predicated region
      $region13: #{bottleneck_forward.5} parent=11 // pred_check
        %p190 = pneg %p60
      $region14: #{bottleneck_forward.5} parent=11 // pred_check_branch
        %192 = sbr.rel (%p190) target = $region16
      $region15: #{bottleneck_forward.5} parent=11 // pred_region
        _
      $region16: #{bottleneck_forward.5} parent=11 // pred_fallthru
        _
      // Predicated region
      $region17: #{bottleneck_forward.5} parent=11 // pred_check
        %p193 = pneg %p81
      $region18: #{bottleneck_forward.5} parent=11 // pred_check_branch
        %195 = sbr.rel (%p193) target = $region20
      $region19: #{bottleneck_forward.5} parent=11 // pred_region
        _
      $region20: #{bottleneck_forward.5} parent=11 // pred_fallthru
        _
      // Predicated region
      $region21: #{bottleneck_forward.5} parent=11 // pred_check
        %p196 = pneg %p102
      $region22: #{bottleneck_forward.5} parent=11 // pred_check_branch
        %198 = sbr.rel (%p196) target = $region24
      $region23: #{bottleneck_forward.5} parent=11 // pred_region
        _
      $region24: #{bottleneck_forward.5} parent=11 // pred_fallthru
        _
      // Predicated region
      $region25: #{bottleneck_forward.5} parent=11 // pred_check
        %p199 = pneg %p123
      $region26: #{bottleneck_forward.5} parent=11 // pred_check_branch
        %201 = sbr.rel (%p199) target = $region28
      $region27: #{bottleneck_forward.5} parent=11 // pred_region
        _
      $region28: #{bottleneck_forward.5} parent=11 // pred_fallthru
        _
    $region12: #{bottleneck_forward.5} parent=5 // pred_fallthru
      _
    %p202 = scmp.lt.s32.totalorder %s13, 2
    // Predicated region
    $region29: #{bottleneck_forward.5} parent=5 // pred_check
      %p203 = pneg %p202
    $region30: #{bottleneck_forward.5} parent=5 // pred_check_branch
      %205 = sbr.rel (%p203) target = $region32
    $region31: #{bottleneck_forward.5} parent=5 // pred_region
      // Predicated region
      $region33: #{bottleneck_forward.5} parent=31 // pred_check
        %p206 = pneg %p33
      $region34: #{bottleneck_forward.5} parent=31 // pred_check_branch
        %208 = sbr.rel (%p206) target = $region36
      $region35: #{bottleneck_forward.5} parent=31 // pred_region
        %p209 = scmp.lt.s32.totalorder %s13, 1
        %s210 = scalar_select %p209, %s13, 1
        %s211 = smul.addr %s210, 8
        %s212 = smul.addr %s211, 8
        %s213 = scalar_lea.vmem %s0, %s212
      $region36: #{bottleneck_forward.5} parent=31 // pred_fallthru
        _
    $region32: #{bottleneck_forward.5} parent=5 // pred_fallthru
      _
    %p214 = scmp.le.s32.totalorder 1, %s13
    %p215 = scmp.lt.s32.totalorder %s13, 3
    %p216 = pnand %p214, %p215
    %p217 = pneg %p216
    // Predicated region
    $region37: #{bottleneck_forward.5} parent=5 // pred_check
      _
    $region38: #{bottleneck_forward.5} parent=5 // pred_check_branch
      %219 = sbr.rel (%p216) target = $region40
    $region39: #{bottleneck_forward.5} parent=5 // pred_region
      %s220 = ssub.s32 %s13, 1
      %p221 = scmp.lt.s32.totalorder %s18, 1
      %s222 = scalar_select %p221, %s18, 1
      %s223 = smul.addr %s222, 8
      %s224 = smul.addr %s223, 8
      %s225 = scalar_lea.vmem %s0, %s224
      %p226 = pneg %p39
      %p227 = pneg %p36
      %p228 = pneg %p60
      %p229 = pneg %p57
      %p230 = pneg %p81
      %p231 = pneg %p78
      %p232 = pneg %p102
      %p233 = pneg %p99
      %p234 = pneg %p123
      %p235 = pneg %p120
      %p236 = pneg %p149
      %p237 = pneg %p146
      %p238 = scmp.lt.s32.totalorder %s18, 1
      %s239 = scalar_select %p238, %s18, 1
      %s240 = smul.addr %s239, 8
      %s241 = smul.addr %s240, 8
      %s242 = scalar_lea.vmem %s5, %s241
      %p243 = pneg %p175
      %p244 = pneg %p172
      %p245 = scmp.lt.s32.totalorder %s18, 1
      %s246 = scalar_select %p245, %s18, 1
      %s247 = smul.addr %s246, 2
      %s248 = scalar_lea.vmem %s6, %s247
      %p249 = scmp.lt.s32.totalorder %s18, 1
      %s250 = scalar_select %p249, %s18, 1
      %s251 = smul.addr %s250, 8
      %s252 = smul.addr %s251, 8
      %s253 = scalar_lea.vmem %s0, %s252
      %p254 = scmp.lt.s32.totalorder %s18, 1
      %s255 = scalar_select %p254, %s18, 1
      %s256 = smul.addr %s255, 8
      %s257 = smul.addr %s256, 8
      %s258 = scalar_lea.vmem %s5, %s257
      %p259 = scmp.lt.s32.totalorder %s18, 1
      %s260 = scalar_select %p259, %s18, 1
      %s261 = smul.addr %s260, 2
      %s262 = scalar_lea.vmem %s6, %s261
      %v263 = vld [vmem:[%s1] sm:$0x3]
      %v264 = vld [vmem:[%s2] sm:$0x1]
      %v265 = vld [vmem:[%s3] sm:$0x1]
      %v266 = vmul.f32 %v263, 0.0078125
      %v267 = vmul.f32 %v266, %v266
      %v269 = vrot.slane %v267, 7
      %v271 = vsub.f32 %v266, %v269
      %v272 = vadd.f32 %v271, 1e-05
      %v273 = vrsqrt.pop %v272
      %v276 = vunpack.c.l.s4 1966171168
      %v277 = vunpack.c.0.s8 %v276
      %v278 = vlaneseq
      %v279 = vshrl.u32 %v278, 7
      %v280 = vsub.s32 %v277, %v279
      %v281 = vrot.slane %v273, %v280
      %v282 = vcombine.high %v281, %v281
      %v284 = vunpack.c.l.s4 1966171168
      %v285 = vunpack.c.0.s8 %v284
      %v286 = vlaneseq
      %v287 = vshrl.u32 %v286, 7
      %v288 = vsub.s32 %v285, %v287
      %v289 = vrot.slane %v282, %v288
      %v291 = vmul.f32 %v264, %v289
      %v292 = vmul.f32 %v266, %v291
      %v293 = vsub.f32 %v265, %v292
      %v294 = vld [vmem:[%s253] sm:$0xff]
      %v295 = vld [vmem:[%s253 + $0x8] sm:$0xff]
      %v296 = vld [vmem:[%s253 + $0x10] sm:$0xff]
      %v297 = vld [vmem:[%s253 + $0x18] sm:$0xff]
      %v298 = vld [vmem:[%s253 + $0x20] sm:$0xff]
      %v299 = vld [vmem:[%s253 + $0x28] sm:$0xff]
      %v300 = vld [vmem:[%s253 + $0x30] sm:$0xff]
      %v301 = vld [vmem:[%s253 + $0x38] sm:$0xff]
      %v303 = vlaneseq
      %v304 = vshrl.u32 %v303, 7
      %v305 = vsub.s32 0, %v304
      %v306 = vrot.slane %v291, %v305
      %v308 = vmul.f32 %v294, %v306
      %v309 = vmul.f32 %v295, %v306
      %v310 = vmul.f32 %v296, %v306
      %v311 = vmul.f32 %v297, %v306
      %v312 = vmul.f32 %v298, %v306
      %v313 = vmul.f32 %v299, %v306
      %v314 = vmul.f32 %v300, %v306
      %v315 = vmul.f32 %v301, %v306
      %v317 = vlaneseq
      %v318 = vshrl.u32 %v317, 7
      %v319 = vsub.s32 0, %v318
      %v320 = vrot.slane %v293, %v319
      %v322 = vadd.f32 %v308, %v320
      %v323 = vadd.f32 %v309, %v320
      %v324 = vadd.f32 %v310, %v320
      %v325 = vadd.f32 %v311, %v320
      %v326 = vadd.f32 %v312, %v320
      %v327 = vadd.f32 %v313, %v320
      %v328 = vadd.f32 %v314, %v320
      %v329 = vadd.f32 %v315, %v320
      %v330 = vmax.f32 %v322, 0.0
      %v331 = vmax.f32 %v323, 0.0
      %v332 = vmax.f32 %v324, 0.0
      %v333 = vmax.f32 %v325, 0.0
      %v334 = vmax.f32 %v326, 0.0
      %v335 = vmax.f32 %v327, 0.0
      %v336 = vmax.f32 %v328, 0.0
      %v337 = vmax.f32 %v329, 0.0
      %vm338 = vcmask 31744
      %339 = vst.msk [vmem:[#allocation2] sm:$0xff] %vm338, 0.0
      %vm340 = vcmask 25600
      %341 = vst.msk [vmem:[#allocation2 + $0x8] sm:$0x3] %vm340, 0.0
      %s342 = scalar_lea.vmem [#allocation2], 144
      %343 = vst.msk [vmem:[%s342] sm:$0xff] %vm338, 0.0
      %344 = vst.msk [vmem:[%s342 + $0x8] sm:$0x3] %vm340, 0.0
      %s345 = scalar_lea.vmem [#allocation2], 16
      %vm346 = vcmask 24576
      %347 = vst.msk [vmem:[%s345] sm:$0x1] %vm346, 0.0
      %348 = vst.msk [vmem:[%s345 + $0x10] sm:$0x1] %vm346, 0.0
      %349 = vst.msk [vmem:[%s345 + $0x20] sm:$0x1] %vm346, 0.0
      %350 = vst.msk [vmem:[%s345 + $0x30] sm:$0x1] %vm346, 0.0
      %351 = vst.msk [vmem:[%s345 + $0x40] sm:$0x1] %vm346, 0.0
      %352 = vst.msk [vmem:[%s345 + $0x50] sm:$0x1] %vm346, 0.0
      %353 = vst.msk [vmem:[%s345 + $0x60] sm:$0x1] %vm346, 0.0
      %354 = vst.msk [vmem:[%s345 + $0x70] sm:$0x1] %vm346, 0.0
      %355 = vst.msk [vmem:[%s345 + $0x9] sm:$0x1] %vm346, 0.0
      %356 = vst.msk [vmem:[%s345 + $0x19] sm:$0x1] %vm346, 0.0
      %357 = vst.msk [vmem:[%s345 + $0x29] sm:$0x1] %vm346, 0.0
      %358 = vst.msk [vmem:[%s345 + $0x39] sm:$0x1] %vm346, 0.0
      %359 = vst.msk [vmem:[%s345 + $0x49] sm:$0x1] %vm346, 0.0
      %360 = vst.msk [vmem:[%s345 + $0x59] sm:$0x1] %vm346, 0.0
      %361 = vst.msk [vmem:[%s345 + $0x69] sm:$0x1] %vm346, 0.0
      %362 = vst.msk [vmem:[%s345 + $0x79] sm:$0x1] %vm346, 0.0
      %363 = vst.msk [vmem:[%s345 + $0x1] sm:$0xff] %vm338, %v330
      %364 = vst.msk [vmem:[%s345 + $0x11] sm:$0xff] %vm338, %v331
      %365 = vst.msk [vmem:[%s345 + $0x21] sm:$0xff] %vm338, %v332
      %366 = vst.msk [vmem:[%s345 + $0x31] sm:$0xff] %vm338, %v333
      %367 = vst.msk [vmem:[%s345 + $0x41] sm:$0xff] %vm338, %v334
      %368 = vst.msk [vmem:[%s345 + $0x51] sm:$0xff] %vm338, %v335
      %369 = vst.msk [vmem:[%s345 + $0x61] sm:$0xff] %vm338, %v336
      %370 = vst.msk [vmem:[%s345 + $0x71] sm:$0xff] %vm338, %v337
      %v371 = vld [vmem:[#allocation2] sm:$0xff]
      %v372 = vld [vmem:[#allocation2 + $0x10] sm:$0xff]
      %v373 = vld [vmem:[#allocation2 + $0x20] sm:$0xff]
      %v374 = vld [vmem:[#allocation2 + $0x30] sm:$0xff]
      %v375 = vld [vmem:[#allocation2 + $0x40] sm:$0xff]
      %v376 = vld [vmem:[#allocation2 + $0x50] sm:$0xff]
      %v377 = vld [vmem:[#allocation2 + $0x60] sm:$0xff]
      %v378 = vld [vmem:[#allocation2 + $0x70] sm:$0xff]
      %v379 = vld [vmem:[#allocation2 + $0x1] sm:$0xff]
      %v380 = vld [vmem:[#allocation2 + $0x11] sm:$0xff]
      %v381 = vld [vmem:[#allocation2 + $0x21] sm:$0xff]
      %v382 = vld [vmem:[#allocation2 + $0x31] sm:$0xff]
      %v383 = vld [vmem:[#allocation2 + $0x41] sm:$0xff]
      %v384 = vld [vmem:[#allocation2 + $0x51] sm:$0xff]
      %v385 = vld [vmem:[#allocation2 + $0x61] sm:$0xff]
      %v386 = vld [vmem:[#allocation2 + $0x71] sm:$0xff]
      %v387 = vld [vmem:[#allocation2 + $0x2] sm:$0xff]
      %v388 = vld [vmem:[#allocation2 + $0x12] sm:$0xff]
      %v389 = vld [vmem:[#allocation2 + $0x22] sm:$0xff]
      %v390 = vld [vmem:[#allocation2 + $0x32] sm:$0xff]
      %v391 = vld [vmem:[#allocation2 + $0x42] sm:$0xff]
      %v392 = vld [vmem:[#allocation2 + $0x52] sm:$0xff]
      %v393 = vld [vmem:[#allocation2 + $0x62] sm:$0xff]
      %v394 = vld [vmem:[#allocation2 + $0x72] sm:$0xff]
      %v395 = vld [vmem:[%s345] sm:$0xff]
      %v396 = vld [vmem:[%s345 + $0x10] sm:$0xff]
      %v397 = vld [vmem:[%s345 + $0x20] sm:$0xff]
      %v398 = vld [vmem:[%s345 + $0x30] sm:$0xff]
      %v399 = vld [vmem:[%s345 + $0x40] sm:$0xff]
      %v400 = vld [vmem:[%s345 + $0x50] sm:$0xff]
      %v401 = vld [vmem:[%s345 + $0x60] sm:$0xff]
      %v402 = vld [vmem:[%s345 + $0x70] sm:$0xff]
      %v403 = vld [vmem:[%s345 + $0x1] sm:$0xff]
      %v404 = vld [vmem:[%s345 + $0x11] sm:$0xff]
      %v405 = vld [vmem:[%s345 + $0x21] sm:$0xff]
      %v406 = vld [vmem:[%s345 + $0x31] sm:$0xff]
      %v407 = vld [vmem:[%s345 + $0x41] sm:$0xff]
      %v408 = vld [vmem:[%s345 + $0x51] sm:$0xff]
      %v409 = vld [vmem:[%s345 + $0x61] sm:$0xff]
      %v410 = vld [vmem:[%s345 + $0x71] sm:$0xff]
      %v411 = vld [vmem:[%s345 + $0x2] sm:$0xff]
      %v412 = vld [vmem:[%s345 + $0x12] sm:$0xff]
      %v413 = vld [vmem:[%s345 + $0x22] sm:$0xff]
      %v414 = vld [vmem:[%s345 + $0x32] sm:$0xff]
      %v415 = vld [vmem:[%s345 + $0x42] sm:$0xff]
      %v416 = vld [vmem:[%s345 + $0x52] sm:$0xff]
      %v417 = vld [vmem:[%s345 + $0x62] sm:$0xff]
      %v418 = vld [vmem:[%s345 + $0x72] sm:$0xff]
      %s419 = scalar_lea.vmem [#allocation2], 32
      %v420 = vld [vmem:[%s419] sm:$0xff]
      %v421 = vld [vmem:[%s419 + $0x10] sm:$0xff]
      %v422 = vld [vmem:[%s419 + $0x20] sm:$0xff]
      %v423 = vld [vmem:[%s419 + $0x30] sm:$0xff]
      %v424 = vld [vmem:[%s419 + $0x40] sm:$0xff]
      %v425 = vld [vmem:[%s419 + $0x50] sm:$0xff]
      %v426 = vld [vmem:[%s419 + $0x60] sm:$0xff]
      %v427 = vld [vmem:[%s419 + $0x70] sm:$0xff]
      %v428 = vld [vmem:[%s419 + $0x1] sm:$0xff]
      %v429 = vld [vmem:[%s419 + $0x11] sm:$0xff]
      %v430 = vld [vmem:[%s419 + $0x21] sm:$0xff]
      %v431 = vld [vmem:[%s419 + $0x31] sm:$0xff]
      %v432 = vld [vmem:[%s419 + $0x41] sm:$0xff]
      %v433 = vld [vmem:[%s419 + $0x51] sm:$0xff]
      %v434 = vld [vmem:[%s419 + $0x61] sm:$0xff]
      %v435 = vld [vmem:[%s419 + $0x71] sm:$0xff]
      %v436 = vld [vmem:[%s419 + $0x2] sm:$0xff]
      %v437 = vld [vmem:[%s419 + $0x12] sm:$0xff]
      %v438 = vld [vmem:[%s419 + $0x22] sm:$0xff]
      %v439 = vld [vmem:[%s419 + $0x32] sm:$0xff]
      %v440 = vld [vmem:[%s419 + $0x42] sm:$0xff]
      %v441 = vld [vmem:[%s419 + $0x52] sm:$0xff]
      %v442 = vld [vmem:[%s419 + $0x62] sm:$0xff]
      %v443 = vld [vmem:[%s419 + $0x72] sm:$0xff]
      %452 = vrot.lane.b32.xlu0 %v379, 4
      %v453 = vpop.permute.xlu0 %452
      %454 = vrot.lane.b32.xlu0 %v380, 4
      %v455 = vpop.permute.xlu0 %454
      %456 = vrot.lane.b32.xlu0 %v381, 4
      %v457 = vpop.permute.xlu0 %456
      %458 = vrot.lane.b32.xlu0 %v382, 4
      %v459 = vpop.permute.xlu0 %458
      %460 = vrot.lane.b32.xlu0 %v383, 4
      %v461 = vpop.permute.xlu0 %460
      %462 = vrot.lane.b32.xlu0 %v384, 4
      %v463 = vpop.permute.xlu0 %462
      %464 = vrot.lane.b32.xlu0 %v385, 4
      %v465 = vpop.permute.xlu0 %464
      %466 = vrot.lane.b32.xlu0 %v386, 4
      %v467 = vpop.permute.xlu0 %466
      %484 = vrot.lane.b32.xlu0 %v387, 8
      %v485 = vpop.permute.xlu0 %484
      %486 = vrot.lane.b32.xlu0 %v388, 8
      %v487 = vpop.permute.xlu0 %486
      %488 = vrot.lane.b32.xlu0 %v389, 8
      %v489 = vpop.permute.xlu0 %488
      %490 = vrot.lane.b32.xlu0 %v390, 8
      %v491 = vpop.permute.xlu0 %490
      %492 = vrot.lane.b32.xlu0 %v391, 8
      %v493 = vpop.permute.xlu0 %492
      %494 = vrot.lane.b32.xlu0 %v392, 8
      %v495 = vpop.permute.xlu0 %494
      %496 = vrot.lane.b32.xlu0 %v393, 8
      %v497 = vpop.permute.xlu0 %496
      %498 = vrot.lane.b32.xlu0 %v394, 8
      %v499 = vpop.permute.xlu0 %498
      %516 = vrot.lane.b32.xlu0 %v395, 12
      %v517 = vpop.permute.xlu0 %516
      %518 = vrot.lane.b32.xlu0 %v396, 12
      %v519 = vpop.permute.xlu0 %518
      %520 = vrot.lane.b32.xlu0 %v397, 12
      %v521 = vpop.permute.xlu0 %520
      %522 = vrot.lane.b32.xlu0 %v398, 12
      %v523 = vpop.permute.xlu0 %522
      %524 = vrot.lane.b32.xlu0 %v399, 12
      %v525 = vpop.permute.xlu0 %524
      %526 = vrot.lane.b32.xlu0 %v400, 12
      %v527 = vpop.permute.xlu0 %526
      %528 = vrot.lane.b32.xlu0 %v401, 12
      %v529 = vpop.permute.xlu0 %528
      %530 = vrot.lane.b32.xlu0 %v402, 12
      %v531 = vpop.permute.xlu0 %530
      %548 = vrot.lane.b32.xlu0 %v403, 16
      %v549 = vpop.permute.xlu0 %548
      %550 = vrot.lane.b32.xlu0 %v404, 16
      %v551 = vpop.permute.xlu0 %550
      %552 = vrot.lane.b32.xlu0 %v405, 16
      %v553 = vpop.permute.xlu0 %552
      %554 = vrot.lane.b32.xlu0 %v406, 16
      %v555 = vpop.permute.xlu0 %554
      %556 = vrot.lane.b32.xlu0 %v407, 16
      %v557 = vpop.permute.xlu0 %556
      %558 = vrot.lane.b32.xlu0 %v408, 16
      %v559 = vpop.permute.xlu0 %558
      %560 = vrot.lane.b32.xlu0 %v409, 16
      %v561 = vpop.permute.xlu0 %560
      %562 = vrot.lane.b32.xlu0 %v410, 16
      %v563 = vpop.permute.xlu0 %562
      %580 = vrot.lane.b32.xlu0 %v411, 20
      %v581 = vpop.permute.xlu0 %580
      %582 = vrot.lane.b32.xlu0 %v412, 20
      %v583 = vpop.permute.xlu0 %582
      %584 = vrot.lane.b32.xlu0 %v413, 20
      %v585 = vpop.permute.xlu0 %584
      %586 = vrot.lane.b32.xlu0 %v414, 20
      %v587 = vpop.permute.xlu0 %586
      %588 = vrot.lane.b32.xlu0 %v415, 20
      %v589 = vpop.permute.xlu0 %588
      %590 = vrot.lane.b32.xlu0 %v416, 20
      %v591 = vpop.permute.xlu0 %590
      %592 = vrot.lane.b32.xlu0 %v417, 20
      %v593 = vpop.permute.xlu0 %592
      %594 = vrot.lane.b32.xlu0 %v418, 20
      %v595 = vpop.permute.xlu0 %594
      %612 = vrot.lane.b32.xlu0 %v420, 24
      %v613 = vpop.permute.xlu0 %612
      %614 = vrot.lane.b32.xlu0 %v421, 24
      %v615 = vpop.permute.xlu0 %614
      %616 = vrot.lane.b32.xlu0 %v422, 24
      %v617 = vpop.permute.xlu0 %616
      %618 = vrot.lane.b32.xlu0 %v423, 24
      %v619 = vpop.permute.xlu0 %618
      %620 = vrot.lane.b32.xlu0 %v424, 24
      %v621 = vpop.permute.xlu0 %620
      %622 = vrot.lane.b32.xlu0 %v425, 24
      %v623 = vpop.permute.xlu0 %622
      %624 = vrot.lane.b32.xlu0 %v426, 24
      %v625 = vpop.permute.xlu0 %624
      %626 = vrot.lane.b32.xlu0 %v427, 24
      %v627 = vpop.permute.xlu0 %626
      %644 = vrot.lane.b32.xlu0 %v428, 28
      %v645 = vpop.permute.xlu0 %644
      %646 = vrot.lane.b32.xlu0 %v429, 28
      %v647 = vpop.permute.xlu0 %646
      %648 = vrot.lane.b32.xlu0 %v430, 28
      %v649 = vpop.permute.xlu0 %648
      %650 = vrot.lane.b32.xlu0 %v431, 28
      %v651 = vpop.permute.xlu0 %650
      %652 = vrot.lane.b32.xlu0 %v432, 28
      %v653 = vpop.permute.xlu0 %652
      %654 = vrot.lane.b32.xlu0 %v433, 28
      %v655 = vpop.permute.xlu0 %654
      %656 = vrot.lane.b32.xlu0 %v434, 28
      %v657 = vpop.permute.xlu0 %656
      %658 = vrot.lane.b32.xlu0 %v435, 28
      %v659 = vpop.permute.xlu0 %658
      %676 = vrot.lane.b32.xlu0 %v436, 32
      %v677 = vpop.permute.xlu0 %676
      %678 = vrot.lane.b32.xlu0 %v437, 32
      %v679 = vpop.permute.xlu0 %678
      %680 = vrot.lane.b32.xlu0 %v438, 32
      %v681 = vpop.permute.xlu0 %680
      %682 = vrot.lane.b32.xlu0 %v439, 32
      %v683 = vpop.permute.xlu0 %682
      %684 = vrot.lane.b32.xlu0 %v440, 32
      %v685 = vpop.permute.xlu0 %684
      %686 = vrot.lane.b32.xlu0 %v441, 32
      %v687 = vpop.permute.xlu0 %686
      %688 = vrot.lane.b32.xlu0 %v442, 32
      %v689 = vpop.permute.xlu0 %688
      %690 = vrot.lane.b32.xlu0 %v443, 32
      %v691 = vpop.permute.xlu0 %690
      %v700 = vsel %vm338, %v371, %v453
      %v701 = vsel %vm338, %v372, %v455
      %v702 = vsel %vm338, %v373, %v457
      %v703 = vsel %vm338, %v374, %v459
      %v704 = vsel %vm338, %v375, %v461
      %v705 = vsel %vm338, %v376, %v463
      %v706 = vsel %vm338, %v377, %v465
      %v707 = vsel %vm338, %v378, %v467
      %vm708 = vcmask 64512
      %v709 = vsel %vm708, %v700, %v485
      %v710 = vsel %vm708, %v701, %v487
      %v711 = vsel %vm708, %v702, %v489
      %v712 = vsel %vm708, %v703, %v491
      %v713 = vsel %vm708, %v704, %v493
      %v714 = vsel %vm708, %v705, %v495
      %v715 = vsel %vm708, %v706, %v497
      %v716 = vsel %vm708, %v707, %v499
      %vm717 = vcmask 97280
      %v718 = vsel %vm717, %v709, %v517
      %v719 = vsel %vm717, %v710, %v519
      %v720 = vsel %vm717, %v711, %v521
      %v721 = vsel %vm717, %v712, %v523
      %v722 = vsel %vm717, %v713, %v525
      %v723 = vsel %vm717, %v714, %v527
      %v724 = vsel %vm717, %v715, %v529
      %v725 = vsel %vm717, %v716, %v531
      %vm726 = vcmask 130048
      %v727 = vsel %vm726, %v718, %v549
      %v728 = vsel %vm726, %v719, %v551
      %v729 = vsel %vm726, %v720, %v553
      %v730 = vsel %vm726, %v721, %v555
      %v731 = vsel %vm726, %v722, %v557
      %v732 = vsel %vm726, %v723, %v559
      %v733 = vsel %vm726, %v724, %v561
      %v734 = vsel %vm726, %v725, %v563
      %vm735 = vcmask 162816
      %v736 = vsel %vm735, %v727, %v581
      %v737 = vsel %vm735, %v728, %v583
      %v738 = vsel %vm735, %v729, %v585
      %v739 = vsel %vm735, %v730, %v587
      %v740 = vsel %vm735, %v731, %v589
      %v741 = vsel %vm735, %v732, %v591
      %v742 = vsel %vm735, %v733, %v593
      %v743 = vsel %vm735, %v734, %v595
      %vm744 = vcmask 195584
      %v745 = vsel %vm744, %v736, %v613
      %v746 = vsel %vm744, %v737, %v615
      %v747 = vsel %vm744, %v738, %v617
      %v748 = vsel %vm744, %v739, %v619
      %v749 = vsel %vm744, %v740, %v621
      %v750 = vsel %vm744, %v741, %v623
      %v751 = vsel %vm744, %v742, %v625
      %v752 = vsel %vm744, %v743, %v627
      %vm753 = vcmask 228352
      %v754 = vsel %vm753, %v745, %v645
      %v755 = vsel %vm753, %v746, %v647
      %v756 = vsel %vm753, %v747, %v649
      %v757 = vsel %vm753, %v748, %v651
      %v758 = vsel %vm753, %v749, %v653
      %v759 = vsel %vm753, %v750, %v655
      %v760 = vsel %vm753, %v751, %v657
      %v761 = vsel %vm753, %v752, %v659
      %vm762 = vcmask 261120
      %v763 = vsel %vm762, %v754, %v677
      %v764 = vsel %vm762, %v755, %v679
      %v765 = vsel %vm762, %v756, %v681
      %v766 = vsel %vm762, %v757, %v683
      %v767 = vsel %vm762, %v758, %v685
      %v768 = vsel %vm762, %v759, %v687
      %v769 = vsel %vm762, %v760, %v689
      %v770 = vsel %vm762, %v761, %v691
      %v771 = vld [vmem:[%s4] sm:$0xff]
      %v772 = vld [vmem:[%s4 + $0x8] sm:$0xff]
      %v773 = vld [vmem:[%s4 + $0x10] sm:$0xff]
      %v774 = vld [vmem:[%s4 + $0x18] sm:$0xff]
      %v775 = vld [vmem:[%s4 + $0x20] sm:$0xf]
      %vm776 = vcmask 293888
      %v778 = vsel %vm776, %v763, 0
      %v781 = vsel %vm776, %v764, 0
      %v784 = vsel %vm776, %v765, 0
      %v787 = vsel %vm776, %v766, 0
      %v790 = vsel %vm776, %v767, 0
      %v793 = vsel %vm776, %v768, 0
      %v796 = vsel %vm776, %v769, 0
      %v799 = vsel %vm776, %v770, 0
      %vm801 = vcmask 1043456
      %v803 = vsel %vm801, %v775, 0
      %805 = vmatprep.subr.mxu0 0.0
      %806 = vmatpush1.msra.mxu0 0.0
      %807 = vmatprep.subr.mxu0 0.0
      %808 = vmatpush1.msra.mxu0 0.0
      %809 = vmatprep.subr.mxu0 0.0
      %810 = vmatpush1.msra.mxu0 0.0
      %811 = vmatprep.subr.mxu0 0.0
      %812 = vmatpush1.msra.mxu0 0.0
      %813 = vmatprep.subr.mxu0 0.0
      %814 = vmatpush1.msra.mxu0 0.0
      %815 = vmatprep.subr.mxu0 0.0
      %816 = vmatpush1.msra.mxu0 0.0
      %817 = vmatprep.subr.mxu0 0.0
      %818 = vmatpush1.msra.mxu0 0.0
      %819 = vmatprep.subr.mxu0 0.0
      %820 = vmatpush1.msra.mxu0 0.0
      %821 = vmatprep.subr.mxu0 0.0
      %822 = vmatpush1.msra.mxu0 0.0
      %823 = vmatprep.subr.mxu0 0.0
      %824 = vmatpush1.msra.mxu0 0.0
      %825 = vmatprep.subr.mxu0 0.0
      %826 = vmatpush1.msra.mxu0 0.0
      %827 = vmatprep.subr.mxu0 0.0
      %828 = vmatpush1.msra.mxu0 %v803
      %829 = vmatprep.subr.mxu0 0.0
      %830 = vmatpush1.msra.mxu0 %v774
      %831 = vmatprep.subr.mxu0 0.0
      %832 = vmatpush1.msra.mxu0 %v773
      %833 = vmatprep.subr.mxu0 0.0
      %834 = vmatpush1.msra.mxu0 %v772
      %835 = vmatprep.subr.mxu0 0.0
      %836 = vmatpush1.msra.mxu0 %v771
      %837 = vmatprep.subr.mxu0 0.0
      %838 = vmatpush2.msra.mxu0 0.0
      %839 = vmatprep.subr.mxu0 0.0
      %840 = vmatpush2.msra.mxu0 0.0
      %841 = vmatprep.subr.mxu0 0.0
      %842 = vmatpush2.msra.mxu0 0.0
      %843 = vmatprep.subr.mxu0 0.0
      %844 = vmatpush2.msra.mxu0 0.0
      %845 = vmatprep.subr.mxu0 0.0
      %846 = vmatpush2.msra.mxu0 0.0
      %847 = vmatprep.subr.mxu0 0.0
      %848 = vmatpush2.msra.mxu0 0.0
      %849 = vmatprep.subr.mxu0 0.0
      %850 = vmatpush2.msra.mxu0 0.0
      %851 = vmatprep.subr.mxu0 0.0
      %852 = vmatpush2.msra.mxu0 0.0
      %853 = vmatprep.subr.mxu0 0.0
      %854 = vmatpush2.msra.mxu0 0.0
      %855 = vmatprep.subr.mxu0 0.0
      %856 = vmatpush2.msra.mxu0 0.0
      %857 = vmatprep.subr.mxu0 0.0
      %858 = vmatpush2.msra.mxu0 0.0
      %859 = vmatprep.subr.mxu0 0.0
      %860 = vmatpush2.msra.mxu0 0.0
      %861 = vmatprep.subr.mxu0 0.0
      %862 = vmatpush2.msra.mxu0 0.0
      %863 = vmatprep.subr.mxu0 0.0
      %864 = vmatpush2.msra.mxu0 0.0
      %865 = vmatprep.subr.mxu0 0.0
      %866 = vmatpush2.msra.mxu0 0.0
      %867 = vmatprep.subr.mxu0 0.0
      %868 = vmatpush2.msra.mxu0 0.0
      %869 = vmatprep.mubr.f32.mxu0 0.0
      %870 = vmatmul.mubr.f32.gmra.mxu0 %v778
      %v871 = vpop.f32.mrf.mxu0
      %v872 = vadd.f32 0.0, %v871
      %v873 = vpop.f32.mrf.mxu0
      %874 = vmatprep.mubr.f32.mxu0 0.0
      %875 = vmatmul.mubr.f32.gmra.mxu0 %v781
      %v876 = vpop.f32.mrf.mxu0
      %v877 = vadd.f32 0.0, %v876
      %v878 = vpop.f32.mrf.mxu0
      %879 = vmatprep.mubr.f32.mxu0 0.0
      %880 = vmatmul.mubr.f32.gmra.mxu0 %v784
      %v881 = vpop.f32.mrf.mxu0
      %v882 = vadd.f32 0.0, %v881
      %v883 = vpop.f32.mrf.mxu0
      %884 = vmatprep.mubr.f32.mxu0 0.0
      %885 = vmatmul.mubr.f32.gmra.mxu0 %v787
      %v886 = vpop.f32.mrf.mxu0
      %v887 = vadd.f32 0.0, %v886
      %v888 = vpop.f32.mrf.mxu0
      %889 = vmatprep.mubr.f32.mxu0 0.0
      %890 = vmatmul.mubr.f32.gmra.mxu0 %v790
      %v891 = vpop.f32.mrf.mxu0
      %v892 = vadd.f32 0.0, %v891
      %v893 = vpop.f32.mrf.mxu0
      %894 = vmatprep.mubr.f32.mxu0 0.0
      %895 = vmatmul.mubr.f32.gmra.mxu0 %v793
      %v896 = vpop.f32.mrf.mxu0
      %v897 = vadd.f32 0.0, %v896
      %v898 = vpop.f32.mrf.mxu0
      %899 = vmatprep.mubr.f32.mxu0 0.0
      %900 = vmatmul.mubr.f32.gmra.mxu0 %v796
      %v901 = vpop.f32.mrf.mxu0
      %v902 = vadd.f32 0.0, %v901
      %v903 = vpop.f32.mrf.mxu0
      %904 = vmatprep.mubr.f32.mxu0 0.0
      %905 = vmatmul.mubr.f32.gmra.mxu0 %v799
      %v906 = vpop.f32.mrf.mxu0
      %v907 = vadd.f32 0.0, %v906
      %v908 = vpop.f32.mrf.mxu0
      %909 = vdwg.mxu0
      %910 = vst.msk [vmem:[%s258] sm:$0xff] %vm338, %v872
      %911 = vst.msk [vmem:[%s258 + $0x8] sm:$0xff] %vm338, %v877
      %912 = vst.msk [vmem:[%s258 + $0x10] sm:$0xff] %vm338, %v882
      %913 = vst.msk [vmem:[%s258 + $0x18] sm:$0xff] %vm338, %v887
      %914 = vst.msk [vmem:[%s258 + $0x20] sm:$0xff] %vm338, %v892
      %915 = vst.msk [vmem:[%s258 + $0x28] sm:$0xff] %vm338, %v897
      %916 = vst.msk [vmem:[%s258 + $0x30] sm:$0xff] %vm338, %v902
      %917 = vst.msk [vmem:[%s258 + $0x38] sm:$0xff] %vm338, %v907
      %v918 = vsel %vm338, %v872, 0.0
      %v919 = vsel %vm338, %v877, 0.0
      %v920 = vadd.f32 %v918, %v919
      %v921 = vsel %vm338, %v882, 0.0
      %v922 = vadd.f32 %v920, %v921
      %v923 = vsel %vm338, %v887, 0.0
      %v924 = vadd.f32 %v922, %v923
      %v925 = vsel %vm338, %v892, 0.0
      %v926 = vadd.f32 %v924, %v925
      %v927 = vsel %vm338, %v897, 0.0
      %v928 = vadd.f32 %v926, %v927
      %v929 = vsel %vm338, %v902, 0.0
      %v930 = vadd.f32 %v928, %v929
      %v931 = vsel %vm338, %v907, 0.0
      %v932 = vadd.f32 %v930, %v931
      %v933 = vrot.slane %v932, 4
      %v934 = vadd.f32 %v932, %v933
      %v935 = vrot.slane %v934, 2
      %v936 = vadd.f32 %v934, %v935
      %v937 = vrot.slane %v936, 1
      %v938 = vadd.f32 %v936, %v937
      %939 = vst.msk [vmem:[%s262] sm:$0x1] %vm346, %v938
      %v940 = vmul.f32 %v872, %v872
      %v941 = vmul.f32 %v877, %v877
      %v942 = vmul.f32 %v882, %v882
      %v943 = vmul.f32 %v887, %v887
      %v944 = vmul.f32 %v892, %v892
      %v945 = vmul.f32 %v897, %v897
      %v946 = vmul.f32 %v902, %v902
      %v947 = vmul.f32 %v907, %v907
      %v948 = vsel %vm338, %v940, 0.0
      %v949 = vsel %vm338, %v941, 0.0
      %v950 = vadd.f32 %v948, %v949
      %v951 = vsel %vm338, %v942, 0.0
      %v952 = vadd.f32 %v950, %v951
      %v953 = vsel %vm338, %v943, 0.0
      %v954 = vadd.f32 %v952, %v953
      %v955 = vsel %vm338, %v944, 0.0
      %v956 = vadd.f32 %v954, %v955
      %v957 = vsel %vm338, %v945, 0.0
      %v958 = vadd.f32 %v956, %v957
      %v959 = vsel %vm338, %v946, 0.0
      %v960 = vadd.f32 %v958, %v959
      %v961 = vsel %vm338, %v947, 0.0
      %v962 = vadd.f32 %v960, %v961
      %v963 = vrot.slane %v962, 4
      %v964 = vadd.f32 %v962, %v963
      %v965 = vrot.slane %v964, 2
      %v966 = vadd.f32 %v964, %v965
      %v967 = vrot.slane %v966, 1
      %v968 = vadd.f32 %v966, %v967
      %969 = vst.msk [vmem:[%s262 + $0x1] sm:$0x1] %vm346, %v968
      %p970 = scmp.lt.s32.totalorder %s18, 1
      %s971 = scalar_select %p970, %s18, 1
      %s972 = smul.addr %s971, 8
      %s973 = smul.addr %s972, 8
      %s974 = scalar_lea.vmem %s5, %s973
      %p975 = scmp.lt.s32.totalorder %s18, 1
      %s976 = scalar_select %p975, %s18, 1
      %s977 = smul.addr %s976, 2
      %s978 = scalar_lea.vmem %s6, %s977
      // Predicated region
      $region41: #{bottleneck_forward.5} parent=39 // pred_check
        %p979 = pneg %p146
      $region42: #{bottleneck_forward.5} parent=39 // pred_check_branch
        %981 = sbr.rel (%p979) target = $region44
      $region43: #{bottleneck_forward.5} parent=39 // pred_region
        _
      $region44: #{bottleneck_forward.5} parent=39 // pred_fallthru
        _
      // Predicated region
      $region45: #{bottleneck_forward.5} parent=39 // pred_check
        %p982 = pneg %p172
      $region46: #{bottleneck_forward.5} parent=39 // pred_check_branch
        %984 = sbr.rel (%p982) target = $region48
      $region47: #{bottleneck_forward.5} parent=39 // pred_region
        _
      $region48: #{bottleneck_forward.5} parent=39 // pred_fallthru
        _
    $region40: #{bottleneck_forward.5} parent=5 // pred_fallthru
      _
    %p985 = scmp.le.s32.totalorder 2, %s13
    // Predicated region
    $region49: #{bottleneck_forward.5} parent=5 // pred_check
      %p986 = pneg %p985
    $region50: #{bottleneck_forward.5} parent=5 // pred_check_branch
      %988 = sbr.rel (%p986) target = $region52
    $region51: #{bottleneck_forward.5} parent=5 // pred_region
      %s989 = ssub.s32 %s13, 2
      // Predicated region
      $region53: #{bottleneck_forward.5} parent=51 // pred_check
        %p990 = pneg %p152
      $region54: #{bottleneck_forward.5} parent=51 // pred_check_branch
        %992 = sbr.rel (%p990) target = $region56
      $region55: #{bottleneck_forward.5} parent=51 // pred_region
        %p993 = scmp.lt.s32.totalorder %s19, 1
        %s994 = scalar_select %p993, %s19, 1
        %s995 = smul.addr %s994, 8
        %s996 = smul.addr %s995, 8
        %s997 = scalar_lea.vmem %s5, %s996
      $region56: #{bottleneck_forward.5} parent=51 // pred_fallthru
        _
      // Predicated region
      $region57: #{bottleneck_forward.5} parent=51 // pred_check
        %p998 = pneg %p178
      $region58: #{bottleneck_forward.5} parent=51 // pred_check_branch
        %1000 = sbr.rel (%p998) target = $region60
      $region59: #{bottleneck_forward.5} parent=51 // pred_region
        %p1001 = scmp.lt.s32.totalorder %s19, 1
        %s1002 = scalar_select %p1001, %s19, 1
        %s1003 = smul.addr %s1002, 2
        %s1004 = scalar_lea.vmem %s6, %s1003
      $region60: #{bottleneck_forward.5} parent=51 // pred_fallthru
        _
    $region52: #{bottleneck_forward.5} parent=5 // pred_fallthru
      _
  $region6: #{bottleneck_forward.5} parent=0 // loop_footer
    %s17 = sadd.s32 1, %s13
  $region7: #{bottleneck_forward.5} parent=0 // loop_footer_branch
    %12 = sbr.rel target = $region3
  $region8: #{bottleneck_forward.5} parent=0 // loop_exit
    _

</llo_original>
